<compile_context>
chip_gen: v7x
topology: tpu7x:2x2x1
jax: 0.10.0
libtpu: 0.0.40
codegen_flags: <defaults>
</compile_context>

<pallas_src>
import functools

import jax
import jax.numpy as jnp
from jax.experimental import pallas as pl
from jax.experimental.pallas import tpu as pltpu

_EPS = 1e-5
_INV_SQRT2 = 0.7071067811865476


# --------------------------- in-kernel math helpers ---------------------------

def _erf_poly(v):
    # Abramowitz & Stegun 7.1.26 rational approximation (|err| <= 1.5e-7).
    # Built only from exp + arithmetic, which all have native Mosaic lowerings.
    a1, a2, a3, a4, a5 = (0.254829592, -0.284496736, 1.421413741,
                          -1.453152027, 1.061405429)
    p = 0.3275911
    sign = jnp.where(v < 0.0, -1.0, 1.0)
    x = jnp.abs(v)
    t = 1.0 / (1.0 + p * x)
    poly = ((((a5 * t + a4) * t + a3) * t + a2) * t + a1) * t
    return sign * (1.0 - poly * jnp.exp(-x * x))


def _gelu_in_kernel(v):
    # exact (erf-based) GELU, matching torch.nn.GELU default (to ~1e-7)
    return 0.5 * v * (1.0 + _erf_poly(v * _INV_SQRT2))


def _sum_all(y):
    # two single-axis reductions (lane reduce then sublane reduce) -> (1, 1)
    return jnp.sum(jnp.sum(y, axis=1, keepdims=True), axis=0, keepdims=True)


def _groupnorm1(y, g_row, b_row):
    # GroupNorm(num_groups=1) over the whole (H, W*C) slab of one sample,
    # one-pass statistics.
    n = y.size
    s = _sum_all(y)
    ss = _sum_all(y * y)
    mean = s / n
    var = jnp.maximum(ss / n - mean * mean, 0.0)
    return (y - mean) * jax.lax.rsqrt(var + _EPS) * g_row + b_row


# --------------------------------- the kernel ---------------------------------

def _double_conv_kernel(x_ref, w1_ref, g1_ref, b1_ref, w2_ref, g2_ref, b2_ref,
                        out_ref, h1pad_ref, *, H, residual):
    # x_ref: (H+2, W*Cin) row-padded, lane-dense input slab of one sample.

    # ---- stage 1: conv3x3 (3 banded matmuls, K = W*Cin) + GN(1) + GELU ----
    h1 = jnp.dot(x_ref[0:H, :], w1_ref[0], preferred_element_type=jnp.float32)
    for kh in (1, 2):
        h1 = h1 + jnp.dot(x_ref[kh:kh + H, :], w1_ref[kh],
                          preferred_element_type=jnp.float32)
    h1 = _gelu_in_kernel(_groupnorm1(h1, g1_ref[...], b1_ref[...]))

    # Keep h1 entirely in VMEM. Interior is stored at sublane-aligned row 8; the
    # halo rows (7 and H+8) stay zero, so the shifted reads below see zero padding.
    h1pad_ref[...] = jnp.zeros_like(h1pad_ref)
    h1pad_ref[8:8 + H, :] = h1

    # ---- stage 2: conv3x3 + GN(1) (+ residual GELU) ----
    h2 = jnp.dot(h1pad_ref[7:7 + H, :], w2_ref[0],
                 preferred_element_type=jnp.float32)
    for kh in (1, 2):
        h2 = h2 + jnp.dot(h1pad_ref[7 + kh:7 + kh + H, :], w2_ref[kh],
                          preferred_element_type=jnp.float32)
    h2 = _groupnorm1(h2, g2_ref[...], b2_ref[...])

    if residual:
        # residual path requires Cin == Cout (as in the PyTorch module);
        # x_ref rows 1..H are the un-padded input in the same (H, W*C) layout.
        h2 = _gelu_in_kernel(x_ref[1:1 + H, :] + h2)

    out_ref[...] = h2.astype(out_ref.dtype)


# ------------------------------ host-side wrapper ------------------------------

def _banded_weights(w_oihw, width):
    """Expand (Cout, Cin, 3, 3) conv weights into 3 banded matrices of shape
    (W*Cin, W*Cout):  banded[kh, wi*Cin+ci, wo*Cout+co] = w[co, ci, kh, wi-wo+1]
    (zero outside the 3-tap band), so a 'same' 3x3 conv over a row-major (H, W*Cin)
    slab becomes three row-shifted matmuls."""
    c_out, c_in, kh_dim, kw_dim = w_oihw.shape
    wi = jnp.arange(width)[:, None]
    wo = jnp.arange(width)[None, :]
    tap = wi - wo + 1                                        # (Wi, Wo)
    valid = ((tap >= 0) & (tap < kw_dim)).astype(w_oihw.dtype)
    tap_c = jnp.clip(tap, 0, kw_dim - 1)
    w_t = jnp.transpose(w_oihw, (2, 1, 0, 3))                # (KH, Cin, Cout, KW)
    gathered = w_t[:, :, :, tap_c]                           # (KH, Cin, Cout, Wi, Wo)
    gathered = gathered * valid[None, None, None, :, :]
    banded = jnp.transpose(gathered, (0, 3, 1, 4, 2))        # (KH, Wi, Cin, Wo, Cout)
    return banded.reshape(kh_dim, width * c_in, width * c_out)


def double_conv_pallas(x_nchw, params, residual):
    """Forward of DoubleConv. x_nchw: (B, Cin, H, W) f32 -> (B, Cout, H, W) f32."""
    B, Cin, H, W = x_nchw.shape
    Cmid = params["w1"].shape[0]
    Cout = params["w2"].shape[0]
    if residual and Cin != Cout:
        raise ValueError("residual DoubleConv requires in_channels == out_channels")

    # NCHW -> lane-dense row slabs (B, H, W*Cin), plus one zero halo row top/bottom.
    x_rows = jnp.transpose(x_nchw, (0, 2, 3, 1)).reshape(B, H, W * Cin)
    x_rows = jnp.pad(x_rows, ((0, 0), (1, 1), (0, 0)))

    w1b = _banded_weights(params["w1"], W)                   # (3, W*Cin,  W*Cmid)
    w2b = _banded_weights(params["w2"], W)                   # (3, W*Cmid, W*Cout)
    g1 = jnp.tile(params["g1"], W).reshape(1, W * Cmid)      # per-column affine
    b1 = jnp.tile(params["b1"], W).reshape(1, W * Cmid)
    g2 = jnp.tile(params["g2"], W).reshape(1, W * Cout)
    b2 = jnp.tile(params["b2"], W).reshape(1, W * Cout)

    kernel = functools.partial(_double_conv_kernel, H=H, residual=residual)

    flops = 2 * B * H * W * W * 3 * (Cin * Cmid + Cmid * Cout)
    transcendentals = B * H * W * (Cmid + (Cout if residual else 0))
    bytes_accessed = 4 * (x_rows.size + w1b.size + w2b.size
                          + g1.size + b1.size + g2.size + b2.size
                          + B * H * W * Cout)

    out2d = pl.pallas_call(
        kernel,
        out_shape=jax.ShapeDtypeStruct((B, H, W * Cout), jnp.float32),
        grid=(B,),
        in_specs=[
            pl.BlockSpec((None, H + 2, W * Cin), lambda b: (b, 0, 0)),
            pl.BlockSpec((3, W * Cin, W * Cmid), lambda b: (0, 0, 0)),
            pl.BlockSpec((1, W * Cmid), lambda b: (0, 0)),
            pl.BlockSpec((1, W * Cmid), lambda b: (0, 0)),
            pl.BlockSpec((3, W * Cmid, W * Cout), lambda b: (0, 0, 0)),
            pl.BlockSpec((1, W * Cout), lambda b: (0, 0)),
            pl.BlockSpec((1, W * Cout), lambda b: (0, 0)),
        ],
        out_specs=pl.BlockSpec((None, H, W * Cout), lambda b: (b, 0, 0)),
        scratch_shapes=[pltpu.VMEM((H + 9, W * Cmid), jnp.float32)],
        compiler_params=pltpu.CompilerParams(
            dimension_semantics=("parallel",),
            vmem_limit_bytes=64 * 1024 * 1024,
        ),
        cost_estimate=pl.CostEstimate(
            flops=flops,
            transcendentals=transcendentals,
            bytes_accessed=bytes_accessed),
    )(x_rows, w1b, g1, b1, w2b, g2, b2)

    # (B, H, W*Cout) -> NCHW
    return jnp.transpose(out2d.reshape(B, H, W, Cout), (0, 3, 1, 2))


# ---------------- pure-JAX reference (for correctness check) ----------------

def _gelu_exact(v):
    return 0.5 * v * (1.0 + jax.lax.erf(v * _INV_SQRT2))


def _ref_conv(x_nchw, w_oihw):
    return jax.lax.conv_general_dilated(
        x_nchw, w_oihw, window_strides=(1, 1), padding=((1, 1), (1, 1)),
        dimension_numbers=("NCHW", "OIHW", "NCHW"))


def _ref_gn(x, g, b):
    mean = x.mean(axis=(1, 2, 3), keepdims=True)
    var = ((x - mean) ** 2).mean(axis=(1, 2, 3), keepdims=True)
    xn = (x - mean) * jax.lax.rsqrt(var + _EPS)
    return xn * g.reshape(1, -1, 1, 1) + b.reshape(1, -1, 1, 1)


def double_conv_ref(x, params, residual):
    h = _gelu_exact(_ref_gn(_ref_conv(x, params["w1"]), params["g1"], params["b1"]))
    h = _ref_gn(_ref_conv(h, params["w2"]), params["g2"], params["b2"])
    if residual:
        return _gelu_exact(x + h)
    return h


# ---------------- parameter init (deterministic, synthetic) ----------------

def make_params(key, in_channels, out_channels, mid_channels=None):
    if not mid_channels:
        mid_channels = out_channels
    k1, k2, k3, k4, k5, k6 = jax.random.split(key, 6)
    s1 = 1.0 / jnp.sqrt(in_channels * 9.0)
    s2 = 1.0 / jnp.sqrt(mid_channels * 9.0)
    return {
        "w1": s1 * jax.random.normal(k1, (mid_channels, in_channels, 3, 3), jnp.float32),
        "g1": 1.0 + 0.1 * jax.random.normal(k2, (mid_channels,), jnp.float32),
        "b1": 0.1 * jax.random.normal(k3, (mid_channels,), jnp.float32),
        "w2": s2 * jax.random.normal(k4, (out_channels, mid_channels, 3, 3), jnp.float32),
        "g2": 1.0 + 0.1 * jax.random.normal(k5, (out_channels,), jnp.float32),
        "b2": 0.1 * jax.random.normal(k6, (out_channels,), jnp.float32),
    }


if __name__ == "__main__":
    key = jax.random.PRNGKey(0)
    kx, kp1, kp2 = jax.random.split(key, 3)

    x = jax.random.normal(kx, (2, 4, 16, 16), jnp.float32)

    # Config 1: plain DoubleConv(4 -> 8), residual=False
    params_a = make_params(kp1, in_channels=4, out_channels=8)
    out_a = jax.block_until_ready(double_conv_pallas(x, params_a, residual=False))
    ref_a = double_conv_ref(x, params_a, residual=False)
    assert out_a.shape == (2, 8, 16, 16)
    assert jnp.allclose(out_a, ref_a, atol=1e-4, rtol=1e-4), "mismatch (non-residual)"

    # Config 2: residual DoubleConv(4 -> 4), residual=True
    params_b = make_params(kp2, in_channels=4, out_channels=4)
    out_b = jax.block_until_ready(double_conv_pallas(x, params_b, residual=True))
    ref_b = double_conv_ref(x, params_b, residual=True)
    assert out_b.shape == (2, 4, 16, 16)
    assert jnp.allclose(out_b, ref_b, atol=1e-4, rtol=1e-4), "mismatch (residual)"

    print("KERNEL_OK")
</pallas_src>

<mosaic_0001>
module attributes {stable_mosaic.version = 11 : i64} {
  func.func @_double_conv_kernel(%arg0: i32, %arg1: memref<1x18x64xf32, #tpu.memory_space<vmem>>, %arg2: memref<3x64x128xf32, #tpu.memory_space<vmem>>, %arg3: memref<1x128xf32, #tpu.memory_space<vmem>>, %arg4: memref<1x128xf32, #tpu.memory_space<vmem>>, %arg5: memref<3x128x128xf32, #tpu.memory_space<vmem>>, %arg6: memref<1x128xf32, #tpu.memory_space<vmem>>, %arg7: memref<1x128xf32, #tpu.memory_space<vmem>>, %arg8: memref<1x16x128xf32, #tpu.memory_space<vmem>>, %arg9: memref<25x128xf32, #tpu.memory_space<vmem>>) attributes {dimension_semantics = [#tpu.dimension_semantics<parallel>], iteration_bounds = array<i64: 2>, scalar_prefetch = 0 : i64, scratch_operands = 1 : i64, tpu.core_type = #tpu.core_type<tc>, window_params = [{transform_indices = @transform_0, window_bounds = array<i64: 1, 18, 64>}, {pipeline_mode = #tpu.pipeline_mode<synchronous>, transform_indices = @transform_1, window_bounds = array<i64: 3, 64, 128>}, {pipeline_mode = #tpu.pipeline_mode<synchronous>, transform_indices = @transform_2, window_bounds = array<i64: 1, 128>}, {pipeline_mode = #tpu.pipeline_mode<synchronous>, transform_indices = @transform_3, window_bounds = array<i64: 1, 128>}, {pipeline_mode = #tpu.pipeline_mode<synchronous>, transform_indices = @transform_4, window_bounds = array<i64: 3, 128, 128>}, {pipeline_mode = #tpu.pipeline_mode<synchronous>, transform_indices = @transform_5, window_bounds = array<i64: 1, 128>}, {pipeline_mode = #tpu.pipeline_mode<synchronous>, transform_indices = @transform_6, window_bounds = array<i64: 1, 128>}, {transform_indices = @transform_7, window_bounds = array<i64: 1, 16, 128>}]} {
    %c0 = arith.constant 0 : index
    %c0_0 = arith.constant 0 : index
    %c0_1 = arith.constant 0 : index
    %0 = vector.load %arg1[%c0, %c0_0, %c0_1] : memref<1x18x64xf32, #tpu.memory_space<vmem>>, vector<1x16x64xf32>
    %1 = vector.shape_cast %0 : vector<1x16x64xf32> to vector<16x64xf32>
    %c0_2 = arith.constant 0 : index
    %c0_3 = arith.constant 0 : index
    %c0_4 = arith.constant 0 : index
    %2 = vector.load %arg2[%c0_2, %c0_3, %c0_4] : memref<3x64x128xf32, #tpu.memory_space<vmem>>, vector<1x64x128xf32>
    %3 = vector.shape_cast %2 : vector<1x64x128xf32> to vector<64x128xf32>
    %cst = arith.constant dense<0.000000e+00> : vector<16x128xf32>
    %4 = tpu.matmul %1, %3, %cst {dimension_numbers = #tpu.dot_dimension_numbers<[1], [0], [0], [1], [0, 0, 1, 1], [], []>} : vector<16x64xf32>, vector<64x128xf32>, vector<16x128xf32> -> vector<16x128xf32>
    %c0_5 = arith.constant 0 : index
    %c1 = arith.constant 1 : index
    %c0_6 = arith.constant 0 : index
    %5 = vector.load %arg1[%c0_5, %c1, %c0_6] : memref<1x18x64xf32, #tpu.memory_space<vmem>>, vector<1x16x64xf32>
    %6 = vector.shape_cast %5 : vector<1x16x64xf32> to vector<16x64xf32>
    %c1_7 = arith.constant 1 : index
    %c0_8 = arith.constant 0 : index
    %c0_9 = arith.constant 0 : index
    %7 = vector.load %arg2[%c1_7, %c0_8, %c0_9] : memref<3x64x128xf32, #tpu.memory_space<vmem>>, vector<1x64x128xf32>
    %8 = vector.shape_cast %7 : vector<1x64x128xf32> to vector<64x128xf32>
    %cst_10 = arith.constant dense<0.000000e+00> : vector<16x128xf32>
    %9 = tpu.matmul %6, %8, %cst_10 {dimension_numbers = #tpu.dot_dimension_numbers<[1], [0], [0], [1], [0, 0, 1, 1], [], []>} : vector<16x64xf32>, vector<64x128xf32>, vector<16x128xf32> -> vector<16x128xf32>
    %10 = arith.addf %4, %9 : vector<16x128xf32>
    %c0_11 = arith.constant 0 : index
    %c2 = arith.constant 2 : index
    %c0_12 = arith.constant 0 : index
    %11 = vector.load %arg1[%c0_11, %c2, %c0_12] : memref<1x18x64xf32, #tpu.memory_space<vmem>>, vector<1x16x64xf32>
    %12 = vector.shape_cast %11 : vector<1x16x64xf32> to vector<16x64xf32>
    %c2_13 = arith.constant 2 : index
    %c0_14 = arith.constant 0 : index
    %c0_15 = arith.constant 0 : index
    %13 = vector.load %arg2[%c2_13, %c0_14, %c0_15] : memref<3x64x128xf32, #tpu.memory_space<vmem>>, vector<1x64x128xf32>
    %14 = vector.shape_cast %13 : vector<1x64x128xf32> to vector<64x128xf32>
    %cst_16 = arith.constant dense<0.000000e+00> : vector<16x128xf32>
    %15 = tpu.matmul %12, %14, %cst_16 {dimension_numbers = #tpu.dot_dimension_numbers<[1], [0], [0], [1], [0, 0, 1, 1], [], []>} : vector<16x64xf32>, vector<64x128xf32>, vector<16x128xf32> -> vector<16x128xf32>
    %16 = arith.addf %10, %15 : vector<16x128xf32>
    %c0_17 = arith.constant 0 : index
    %c0_18 = arith.constant 0 : index
    %17 = vector.load %arg3[%c0_17, %c0_18] : memref<1x128xf32, #tpu.memory_space<vmem>>, vector<1x128xf32>
    %c0_19 = arith.constant 0 : index
    %c0_20 = arith.constant 0 : index
    %18 = vector.load %arg4[%c0_19, %c0_20] : memref<1x128xf32, #tpu.memory_space<vmem>>, vector<1x128xf32>
    %cst_21 = arith.constant dense<0.000000e+00> : vector<16xf32>
    %19 = vector.multi_reduction <add>, %16, %cst_21 [1] : vector<16x128xf32> to vector<16xf32>
    %20 = vector.shape_cast %19 : vector<16xf32> to vector<16x1xf32>
    %cst_22 = arith.constant dense<0.000000e+00> : vector<1xf32>
    %21 = vector.multi_reduction <add>, %20, %cst_22 [0] : vector<16x1xf32> to vector<1xf32>
    %22 = vector.shape_cast %21 : vector<1xf32> to vector<1x1xf32>
    %23 = arith.mulf %16, %16 : vector<16x128xf32>
    %cst_23 = arith.constant dense<0.000000e+00> : vector<16xf32>
    %24 = vector.multi_reduction <add>, %23, %cst_23 [1] : vector<16x128xf32> to vector<16xf32>
    %25 = vector.shape_cast %24 : vector<16xf32> to vector<16x1xf32>
    %cst_24 = arith.constant dense<0.000000e+00> : vector<1xf32>
    %26 = vector.multi_reduction <add>, %25, %cst_24 [0] : vector<16x1xf32> to vector<1xf32>
    %27 = vector.shape_cast %26 : vector<1xf32> to vector<1x1xf32>
    %cst_25 = arith.constant 2.048000e+03 : f32
    %28 = vector.broadcast %cst_25 : f32 to vector<1x1xf32>
    %29 = arith.divf %22, %28 : vector<1x1xf32>
    %cst_26 = arith.constant 2.048000e+03 : f32
    %30 = vector.broadcast %cst_26 : f32 to vector<1x1xf32>
    %31 = arith.divf %27, %30 : vector<1x1xf32>
    %32 = arith.mulf %29, %29 : vector<1x1xf32>
    %33 = arith.subf %31, %32 : vector<1x1xf32>
    %cst_27 = arith.constant 0.000000e+00 : f32
    %34 = vector.broadcast %cst_27 : f32 to vector<1x1xf32>
    %35 = arith.maximumf %33, %34 : vector<1x1xf32>
    %36 = vector.broadcast %29 : vector<1x1xf32> to vector<16x128xf32>
    %37 = arith.subf %16, %36 : vector<16x128xf32>
    %cst_28 = arith.constant 9.99999974E-6 : f32
    %38 = vector.broadcast %cst_28 : f32 to vector<1x1xf32>
    %39 = arith.addf %35, %38 : vector<1x1xf32>
    %40 = math.rsqrt %39 : vector<1x1xf32>
    %41 = vector.broadcast %40 : vector<1x1xf32> to vector<16x128xf32>
    %42 = arith.mulf %37, %41 : vector<16x128xf32>
    %43 = vector.broadcast %17 : vector<1x128xf32> to vector<16x128xf32>
    %44 = arith.mulf %42, %43 : vector<16x128xf32>
    %45 = vector.broadcast %18 : vector<1x128xf32> to vector<16x128xf32>
    %46 = arith.addf %44, %45 : vector<16x128xf32>
    %cst_29 = arith.constant 5.000000e-01 : f32
    %47 = vector.broadcast %cst_29 : f32 to vector<16x128xf32>
    %48 = arith.mulf %47, %46 : vector<16x128xf32>
    %cst_30 = arith.constant 0.707106769 : f32
    %49 = vector.broadcast %cst_30 : f32 to vector<16x128xf32>
    %50 = arith.mulf %46, %49 : vector<16x128xf32>
    %cst_31 = arith.constant 0.000000e+00 : f32
    %51 = vector.broadcast %cst_31 : f32 to vector<16x128xf32>
    %52 = arith.cmpf olt, %50, %51 : vector<16x128xf32>
    %cst_32 = arith.constant -1.000000e+00 : f32
    %cst_33 = arith.constant 1.000000e+00 : f32
    %53 = vector.broadcast %cst_32 : f32 to vector<16x128xf32>
    %54 = vector.broadcast %cst_33 : f32 to vector<16x128xf32>
    %55 = arith.select %52, %53, %54 : vector<16x128xi1>, vector<16x128xf32>
    %56 = math.absf %50 : vector<16x128xf32>
    %cst_34 = arith.constant 0.327591091 : f32
    %57 = vector.broadcast %cst_34 : f32 to vector<16x128xf32>
    %58 = arith.mulf %57, %56 : vector<16x128xf32>
    %cst_35 = arith.constant 1.000000e+00 : f32
    %59 = vector.broadcast %cst_35 : f32 to vector<16x128xf32>
    %60 = arith.addf %59, %58 : vector<16x128xf32>
    %cst_36 = arith.constant 1.000000e+00 : f32
    %61 = vector.broadcast %cst_36 : f32 to vector<16x128xf32>
    %62 = arith.divf %61, %60 : vector<16x128xf32>
    %cst_37 = arith.constant 1.06140542 : f32
    %63 = vector.broadcast %cst_37 : f32 to vector<16x128xf32>
    %64 = arith.mulf %63, %62 : vector<16x128xf32>
    %cst_38 = arith.constant -1.45315206 : f32
    %65 = vector.broadcast %cst_38 : f32 to vector<16x128xf32>
    %66 = arith.addf %64, %65 : vector<16x128xf32>
    %67 = arith.mulf %66, %62 : vector<16x128xf32>
    %cst_39 = arith.constant 1.42141378 : f32
    %68 = vector.broadcast %cst_39 : f32 to vector<16x128xf32>
    %69 = arith.addf %67, %68 : vector<16x128xf32>
    %70 = arith.mulf %69, %62 : vector<16x128xf32>
    %cst_40 = arith.constant -0.284496725 : f32
    %71 = vector.broadcast %cst_40 : f32 to vector<16x128xf32>
    %72 = arith.addf %70, %71 : vector<16x128xf32>
    %73 = arith.mulf %72, %62 : vector<16x128xf32>
    %cst_41 = arith.constant 0.254829586 : f32
    %74 = vector.broadcast %cst_41 : f32 to vector<16x128xf32>
    %75 = arith.addf %73, %74 : vector<16x128xf32>
    %76 = arith.mulf %75, %62 : vector<16x128xf32>
    %cst_42 = arith.constant 0.000000e+00 : f32
    %77 = vector.broadcast %cst_42 : f32 to vector<16x128xf32>
    %78 = arith.subf %77, %56 : vector<16x128xf32>
    %79 = arith.mulf %78, %56 : vector<16x128xf32>
    %80 = math.exp %79 : vector<16x128xf32>
    %81 = arith.mulf %76, %80 : vector<16x128xf32>
    %cst_43 = arith.constant 1.000000e+00 : f32
    %82 = vector.broadcast %cst_43 : f32 to vector<16x128xf32>
    %83 = arith.subf %82, %81 : vector<16x128xf32>
    %84 = arith.mulf %55, %83 : vector<16x128xf32>
    %cst_44 = arith.constant 1.000000e+00 : f32
    %85 = vector.broadcast %cst_44 : f32 to vector<16x128xf32>
    %86 = arith.addf %85, %84 : vector<16x128xf32>
    %87 = arith.mulf %48, %86 : vector<16x128xf32>
    %cst_45 = arith.constant 0.000000e+00 : f32
    %88 = vector.broadcast %cst_45 : f32 to vector<25x128xf32>
    %c0_46 = arith.constant 0 : index
    %c0_47 = arith.constant 0 : index
    %89 = vector.load %arg9[%c0_46, %c0_47] : memref<25x128xf32, #tpu.memory_space<vmem>>, vector<25x128xf32>
    tpu.vector_store %arg9[%c0_46, %c0_47], %88 {strides = array<i32>} : memref<25x128xf32, #tpu.memory_space<vmem>>, vector<25x128xf32>,
    %c8 = arith.constant 8 : index
    %c0_48 = arith.constant 0 : index
    %90 = vector.load %arg9[%c8, %c0_48] : memref<25x128xf32, #tpu.memory_space<vmem>>, vector<16x128xf32>
    tpu.vector_store %arg9[%c8, %c0_48], %87 {strides = array<i32>} : memref<25x128xf32, #tpu.memory_space<vmem>>, vector<16x128xf32>,
    %c7 = arith.constant 7 : index
    %c0_49 = arith.constant 0 : index
    %91 = vector.load %arg9[%c7, %c0_49] : memref<25x128xf32, #tpu.memory_space<vmem>>, vector<16x128xf32>
    %c0_50 = arith.constant 0 : index
    %c0_51 = arith.constant 0 : index
    %c0_52 = arith.constant 0 : index
    %92 = vector.load %arg5[%c0_50, %c0_51, %c0_52] : memref<3x128x128xf32, #tpu.memory_space<vmem>>, vector<1x128x128xf32>
    %93 = vector.shape_cast %92 : vector<1x128x128xf32> to vector<128x128xf32>
    %cst_53 = arith.constant dense<0.000000e+00> : vector<16x128xf32>
    %94 = tpu.matmul %91, %93, %cst_53 {dimension_numbers = #tpu.dot_dimension_numbers<[1], [0], [0], [1], [0, 0, 1, 1], [], []>} : vector<16x128xf32>, vector<128x128xf32>, vector<16x128xf32> -> vector<16x128xf32>
    %c8_54 = arith.constant 8 : index
    %c0_55 = arith.constant 0 : index
    %95 = vector.load %arg9[%c8_54, %c0_55] : memref<25x128xf32, #tpu.memory_space<vmem>>, vector<16x128xf32>
    %c1_56 = arith.constant 1 : index
    %c0_57 = arith.constant 0 : index
    %c0_58 = arith.constant 0 : index
    %96 = vector.load %arg5[%c1_56, %c0_57, %c0_58] : memref<3x128x128xf32, #tpu.memory_space<vmem>>, vector<1x128x128xf32>
    %97 = vector.shape_cast %96 : vector<1x128x128xf32> to vector<128x128xf32>
    %cst_59 = arith.constant dense<0.000000e+00> : vector<16x128xf32>
    %98 = tpu.matmul %95, %97, %cst_59 {dimension_numbers = #tpu.dot_dimension_numbers<[1], [0], [0], [1], [0, 0, 1, 1], [], []>} : vector<16x128xf32>, vector<128x128xf32>, vector<16x128xf32> -> vector<16x128xf32>
    %99 = arith.addf %94, %98 : vector<16x128xf32>
    %c9 = arith.constant 9 : index
    %c0_60 = arith.constant 0 : index
    %100 = vector.load %arg9[%c9, %c0_60] : memref<25x128xf32, #tpu.memory_space<vmem>>, vector<16x128xf32>
    %c2_61 = arith.constant 2 : index
    %c0_62 = arith.constant 0 : index
    %c0_63 = arith.constant 0 : index
    %101 = vector.load %arg5[%c2_61, %c0_62, %c0_63] : memref<3x128x128xf32, #tpu.memory_space<vmem>>, vector<1x128x128xf32>
    %102 = vector.shape_cast %101 : vector<1x128x128xf32> to vector<128x128xf32>
    %cst_64 = arith.constant dense<0.000000e+00> : vector<16x128xf32>
    %103 = tpu.matmul %100, %102, %cst_64 {dimension_numbers = #tpu.dot_dimension_numbers<[1], [0], [0], [1], [0, 0, 1, 1], [], []>} : vector<16x128xf32>, vector<128x128xf32>, vector<16x128xf32> -> vector<16x128xf32>
    %104 = arith.addf %99, %103 : vector<16x128xf32>
    %c0_65 = arith.constant 0 : index
    %c0_66 = arith.constant 0 : index
    %105 = vector.load %arg6[%c0_65, %c0_66] : memref<1x128xf32, #tpu.memory_space<vmem>>, vector<1x128xf32>
    %c0_67 = arith.constant 0 : index
    %c0_68 = arith.constant 0 : index
    %106 = vector.load %arg7[%c0_67, %c0_68] : memref<1x128xf32, #tpu.memory_space<vmem>>, vector<1x128xf32>
    %cst_69 = arith.constant dense<0.000000e+00> : vector<16xf32>
    %107 = vector.multi_reduction <add>, %104, %cst_69 [1] : vector<16x128xf32> to vector<16xf32>
    %108 = vector.shape_cast %107 : vector<16xf32> to vector<16x1xf32>
    %cst_70 = arith.constant dense<0.000000e+00> : vector<1xf32>
    %109 = vector.multi_reduction <add>, %108, %cst_70 [0] : vector<16x1xf32> to vector<1xf32>
    %110 = vector.shape_cast %109 : vector<1xf32> to vector<1x1xf32>
    %111 = arith.mulf %104, %104 : vector<16x128xf32>
    %cst_71 = arith.constant dense<0.000000e+00> : vector<16xf32>
    %112 = vector.multi_reduction <add>, %111, %cst_71 [1] : vector<16x128xf32> to vector<16xf32>
    %113 = vector.shape_cast %112 : vector<16xf32> to vector<16x1xf32>
    %cst_72 = arith.constant dense<0.000000e+00> : vector<1xf32>
    %114 = vector.multi_reduction <add>, %113, %cst_72 [0] : vector<16x1xf32> to vector<1xf32>
    %115 = vector.shape_cast %114 : vector<1xf32> to vector<1x1xf32>
    %cst_73 = arith.constant 2.048000e+03 : f32
    %116 = vector.broadcast %cst_73 : f32 to vector<1x1xf32>
    %117 = arith.divf %110, %116 : vector<1x1xf32>
    %cst_74 = arith.constant 2.048000e+03 : f32
    %118 = vector.broadcast %cst_74 : f32 to vector<1x1xf32>
    %119 = arith.divf %115, %118 : vector<1x1xf32>
    %120 = arith.mulf %117, %117 : vector<1x1xf32>
    %121 = arith.subf %119, %120 : vector<1x1xf32>
    %cst_75 = arith.constant 0.000000e+00 : f32
    %122 = vector.broadcast %cst_75 : f32 to vector<1x1xf32>
    %123 = arith.maximumf %121, %122 : vector<1x1xf32>
    %124 = vector.broadcast %117 : vector<1x1xf32> to vector<16x128xf32>
    %125 = arith.subf %104, %124 : vector<16x128xf32>
    %cst_76 = arith.constant 9.99999974E-6 : f32
    %126 = vector.broadcast %cst_76 : f32 to vector<1x1xf32>
    %127 = arith.addf %123, %126 : vector<1x1xf32>
    %128 = math.rsqrt %127 : vector<1x1xf32>
    %129 = vector.broadcast %128 : vector<1x1xf32> to vector<16x128xf32>
    %130 = arith.mulf %125, %129 : vector<16x128xf32>
    %131 = vector.broadcast %105 : vector<1x128xf32> to vector<16x128xf32>
    %132 = arith.mulf %130, %131 : vector<16x128xf32>
    %133 = vector.broadcast %106 : vector<1x128xf32> to vector<16x128xf32>
    %134 = arith.addf %132, %133 : vector<16x128xf32>
    %c0_77 = arith.constant 0 : index
    %c0_78 = arith.constant 0 : index
    %c0_79 = arith.constant 0 : index
    %135 = vector.load %arg8[%c0_77, %c0_78, %c0_79] : memref<1x16x128xf32, #tpu.memory_space<vmem>>, vector<1x16x128xf32>
    %136 = vector.shape_cast %135 : vector<1x16x128xf32> to vector<16x128xf32>
    %137 = vector.shape_cast %134 : vector<16x128xf32> to vector<1x16x128xf32>
    tpu.vector_store %arg8[%c0_77, %c0_78, %c0_79], %137 {strides = array<i32>} : memref<1x16x128xf32, #tpu.memory_space<vmem>>, vector<1x16x128xf32>,
    return
  }
  func.func @transform_0(%arg0: i32) -> (i32, i32, i32) {
    %c0_i32 = arith.constant 0 : i32
    %c0_i32_0 = arith.constant 0 : i32
    %c0_i32_1 = arith.constant 0 : i32
    return %arg0, %c0_i32, %c0_i32_0 : i32, i32, i32
  }
  func.func @transform_1(%arg0: i32) -> (i32, i32, i32) {
    %c0_i32 = arith.constant 0 : i32
    %c0_i32_0 = arith.constant 0 : i32
    %c0_i32_1 = arith.constant 0 : i32
    %c0_i32_2 = arith.constant 0 : i32
    return %c0_i32, %c0_i32_0, %c0_i32_1 : i32, i32, i32
  }
  func.func @transform_2(%arg0: i32) -> (i32, i32) {
    %c0_i32 = arith.constant 0 : i32
    %c0_i32_0 = arith.constant 0 : i32
    %c0_i32_1 = arith.constant 0 : i32
    return %c0_i32, %c0_i32_0 : i32, i32
  }
  func.func @transform_3(%arg0: i32) -> (i32, i32) {
    %c0_i32 = arith.constant 0 : i32
    %c0_i32_0 = arith.constant 0 : i32
    %c0_i32_1 = arith.constant 0 : i32
    return %c0_i32, %c0_i32_0 : i32, i32
  }
  func.func @transform_4(%arg0: i32) -> (i32, i32, i32) {
    %c0_i32 = arith.constant 0 : i32
    %c0_i32_0 = arith.constant 0 : i32
    %c0_i32_1 = arith.constant 0 : i32
    %c0_i32_2 = arith.constant 0 : i32
    return %c0_i32, %c0_i32_0, %c0_i32_1 : i32, i32, i32
  }
  func.func @transform_5(%arg0: i32) -> (i32, i32) {
    %c0_i32 = arith.constant 0 : i32
    %c0_i32_0 = arith.constant 0 : i32
    %c0_i32_1 = arith.constant 0 : i32
    return %c0_i32, %c0_i32_0 : i32, i32
  }
  func.func @transform_6(%arg0: i32) -> (i32, i32) {
    %c0_i32 = arith.constant 0 : i32
    %c0_i32_0 = arith.constant 0 : i32
    %c0_i32_1 = arith.constant 0 : i32
    return %c0_i32, %c0_i32_0 : i32, i32
  }
  func.func @transform_7(%arg0: i32) -> (i32, i32, i32) {
    %c0_i32 = arith.constant 0 : i32
    %c0_i32_0 = arith.constant 0 : i32
    %c0_i32_1 = arith.constant 0 : i32
    return %arg0, %c0_i32, %c0_i32_0 : i32, i32, i32
  }
}

</mosaic_0001>

<llo_original>
// kernel: tpu_custom_call.1
$region0: #{tpu_custom_call.1}
  #allocation0 [shape = 'u32[]', space=smem, size = 0x4, offset = 0x4, fixed_abs, tag = 'smem constant byte address 0x4 - core index']
  #allocation1 [shape = 'u32[144,128]{1,0:T(1,128)}', space=vmem, size = 0x12000, scoped, tag = 'internal scratch']
  #allocation2 [shape = 'f32[25,128]{1,0:T(8,128)}', space=vmem, size = 0x4000, scoped, tag = 'scratch operand']
  %s0 = inlined_call_operand.hbm [shape: f32[2,18,64], index: 0, kind: input, shape index: {}]
  %s1 = inlined_call_operand.hbm [shape: f32[3,64,128], index: 1, kind: input, shape index: {}]
  %s2 = inlined_call_operand.hbm [shape: f32[1,128], index: 2, kind: input, shape index: {}]
  %s3 = inlined_call_operand.hbm [shape: f32[1,128], index: 3, kind: input, shape index: {}]
  %s4 = inlined_call_operand.hbm [shape: f32[3,128,128], index: 4, kind: input, shape index: {}]
  %s5 = inlined_call_operand.hbm [shape: f32[1,128], index: 5, kind: input, shape index: {}]
  %s6 = inlined_call_operand.hbm [shape: f32[1,128], index: 6, kind: input, shape index: {}]
  %s7 = inlined_call_operand.hbm [shape: f32[2,16,128], index: 7, kind: output, shape index: {}]
  %s8 = sld [smem:[#allocation0]]
  $region89: #{tpu_custom_call.1} parent=0
    _
  %s10 = ssub.s32 1, %s8
  %s11 = scalar_select 0, %s10, %s8
  $region1: #{tpu_custom_call.1} parent=0
    #allocation3 [shape = 'u8[24576]{0}', space=vmem, size = 0x6000, scoped, tag = 'input window, operand 0']
    #allocation4 [shape = 's32[2]{0}', space=sflag, size = 0x8, scoped, tag = 'scoped memory for tpu_custom_call.1']
    #allocation5 [shape = 's32[2]{0}', space=sflag, size = 0x8, scoped, tag = 'scoped memory for tpu_custom_call.1']
    #allocation6 [shape = 'u8[98304]{0}', space=vmem, size = 0x18000, scoped, tag = 'input window, operand 1, single buffered']
    #allocation7 [shape = 's32[1]{0}', space=sflag, size = 0x4, scoped, tag = 'scoped memory for tpu_custom_call.1']
    #allocation8 [shape = 'u8[512]{0}', space=vmem, size = 0x400, scoped, tag = 'input window, operand 2, single buffered']
    #allocation9 [shape = 'u8[512]{0}', space=vmem, size = 0x400, scoped, tag = 'input window, operand 3, single buffered']
    #allocation10 [shape = 's32[1]{0}', space=sflag, size = 0x4, scoped, tag = 'scoped memory for tpu_custom_call.1']
    #allocation11 [shape = 'u8[196608]{0}', space=vmem, size = 0x30000, scoped, tag = 'input window, operand 4, single buffered']
    #allocation12 [shape = 'u8[512]{0}', space=vmem, size = 0x400, scoped, tag = 'input window, operand 5, single buffered']
    #allocation13 [shape = 's32[1]{0}', space=sflag, size = 0x4, scoped, tag = 'scoped memory for tpu_custom_call.1']
    #allocation14 [shape = 'u8[512]{0}', space=vmem, size = 0x400, scoped, tag = 'input window, operand 6, single buffered']
    #allocation15 [shape = 'u8[16384]{0}', space=vmem, size = 0x4000, scoped, tag = 'output window, operand 0']
    %12 = vsyncpa [#allocation4], 0
    %s13 = scalar_lea.sflag [#allocation4], 1
    %14 = vsyncpa %s13, 0
    %15 = vsyncpa [#allocation7], 0
    %16 = vsyncpa [#allocation10], 0
    %17 = vsyncpa [#allocation13], 0
    %18 = vsyncpa [#allocation5], 0
    %s19 = scalar_lea.sflag [#allocation5], 1
    %20 = vsyncpa %s19, 0
    loop: start=0, step=1, limit=4
    $region2: #{tpu_custom_call.1} parent=1 // loop_pre_header
      _
    $region3: #{tpu_custom_call.1} parent=1 // loop_header
      %s22 = sphi 0, %s26
      %p23 = scmp.ge.s32.totalorder %s22, 4
      %s32 = sphi 0, %s34
      %s35 = sphi 0, %s32
      %s36 = sphi 0, %s35
      %s52 = sphi 0, %s36
      %s56 = sphi 0, %s56
      %s58 = sphi 0, %s56
      %s59 = sphi 0, %s58
      %s73 = sphi 0, %s59
      %s77 = sphi 0, %s77
      %s79 = sphi 0, %s77
      %s80 = sphi 0, %s79
      %s94 = sphi 0, %s80
      %s98 = sphi 0, %s98
      %s100 = sphi 0, %s98
      %s101 = sphi 0, %s100
      %s115 = sphi 0, %s101
      %s119 = sphi 0, %s119
      %s121 = sphi 0, %s119
      %s122 = sphi 0, %s121
      %s136 = sphi 0, %s122
      %s140 = sphi 0, %s140
      %s142 = sphi 0, %s140
      %s143 = sphi 0, %s142
      %s157 = sphi 0, %s143
      %s161 = sphi 0, %s161
      %s163 = sphi 0, %s161
      %s164 = sphi 0, %s163
      %s178 = sphi 0, %s164
      %s184 = sphi 0, %s186
      %s187 = sphi 0, %s184
      %s188 = sphi 0, %s187
      %s204 = sphi 0, %s188
    $region4: #{tpu_custom_call.1} parent=1 // loop_header_branch
      %25 = sbr.rel (%p23) target = $region8
    $region5: #{tpu_custom_call.1} parent=1 // loop_body
      %s27 = ssub.s32 %s22, 1
      %s28 = ssub.s32 %s22, 2
      %s29 = sadd.s32 %s22, 1
      %s30 = ssub.s32 %s22, %s29
      %p31 = scmp.eq.s32.totalorder %s30, 0
      %s33 = sadd.s32 %s32, 1
      %s34 = scalar_select %p31, %s32, %s33
      %p37 = pneg %p31
      %p38 = scmp.eq.s32.totalorder %s22, 1
      %p39 = por %p37, %p38
      %p40 = scmp.ne.s32.totalorder %s32, %s35
      %p41 = scmp.eq.s32.totalorder %s22, 0
      %p42 = por %p40, %p41
      %p43 = scmp.ne.s32.totalorder %s32, %s35
      %p44 = scmp.eq.s32.totalorder %s27, 1
      %p45 = por %p43, %p44
      %p46 = scmp.ne.s32.totalorder %s35, %s36
      %p47 = scmp.eq.s32.totalorder %s27, 0
      %p48 = por %p46, %p47
      %p49 = scmp.ne.s32.totalorder %s35, %s36
      %p50 = scmp.eq.s32.totalorder %s28, 1
      %p51 = por %p49, %p50
      %p53 = scmp.ne.s32.totalorder %s36, %s52
      %p54 = scmp.eq.s32.totalorder %s28, 0
      %p55 = por %p53, %p54
      %s57 = sadd.s32 %s56, 1
      %p60 = scmp.eq.s32.totalorder %s22, 1
      %p61 = scmp.ne.s32.totalorder %s56, %s58
      %p62 = scmp.eq.s32.totalorder %s22, 0
      %p63 = por %p61, %p62
      %p64 = scmp.ne.s32.totalorder %s56, %s58
      %p65 = scmp.eq.s32.totalorder %s27, 1
      %p66 = por %p64, %p65
      %p67 = scmp.ne.s32.totalorder %s58, %s59
      %p68 = scmp.eq.s32.totalorder %s27, 0
      %p69 = por %p67, %p68
      %p70 = scmp.ne.s32.totalorder %s58, %s59
      %p71 = scmp.eq.s32.totalorder %s28, 1
      %p72 = por %p70, %p71
      %p74 = scmp.ne.s32.totalorder %s59, %s73
      %p75 = scmp.eq.s32.totalorder %s28, 0
      %p76 = por %p74, %p75
      %s78 = sadd.s32 %s77, 1
      %p81 = scmp.eq.s32.totalorder %s22, 1
      %p82 = scmp.ne.s32.totalorder %s77, %s79
      %p83 = scmp.eq.s32.totalorder %s22, 0
      %p84 = por %p82, %p83
      %p85 = scmp.ne.s32.totalorder %s77, %s79
      %p86 = scmp.eq.s32.totalorder %s27, 1
      %p87 = por %p85, %p86
      %p88 = scmp.ne.s32.totalorder %s79, %s80
      %p89 = scmp.eq.s32.totalorder %s27, 0
      %p90 = por %p88, %p89
      %p91 = scmp.ne.s32.totalorder %s79, %s80
      %p92 = scmp.eq.s32.totalorder %s28, 1
      %p93 = por %p91, %p92
      %p95 = scmp.ne.s32.totalorder %s80, %s94
      %p96 = scmp.eq.s32.totalorder %s28, 0
      %p97 = por %p95, %p96
      %s99 = sadd.s32 %s98, 1
      %p102 = scmp.eq.s32.totalorder %s22, 1
      %p103 = scmp.ne.s32.totalorder %s98, %s100
      %p104 = scmp.eq.s32.totalorder %s22, 0
      %p105 = por %p103, %p104
      %p106 = scmp.ne.s32.totalorder %s98, %s100
      %p107 = scmp.eq.s32.totalorder %s27, 1
      %p108 = por %p106, %p107
      %p109 = scmp.ne.s32.totalorder %s100, %s101
      %p110 = scmp.eq.s32.totalorder %s27, 0
      %p111 = por %p109, %p110
      %p112 = scmp.ne.s32.totalorder %s100, %s101
      %p113 = scmp.eq.s32.totalorder %s28, 1
      %p114 = por %p112, %p113
      %p116 = scmp.ne.s32.totalorder %s101, %s115
      %p117 = scmp.eq.s32.totalorder %s28, 0
      %p118 = por %p116, %p117
      %s120 = sadd.s32 %s119, 1
      %p123 = scmp.eq.s32.totalorder %s22, 1
      %p124 = scmp.ne.s32.totalorder %s119, %s121
      %p125 = scmp.eq.s32.totalorder %s22, 0
      %p126 = por %p124, %p125
      %p127 = scmp.ne.s32.totalorder %s119, %s121
      %p128 = scmp.eq.s32.totalorder %s27, 1
      %p129 = por %p127, %p128
      %p130 = scmp.ne.s32.totalorder %s121, %s122
      %p131 = scmp.eq.s32.totalorder %s27, 0
      %p132 = por %p130, %p131
      %p133 = scmp.ne.s32.totalorder %s121, %s122
      %p134 = scmp.eq.s32.totalorder %s28, 1
      %p135 = por %p133, %p134
      %p137 = scmp.ne.s32.totalorder %s122, %s136
      %p138 = scmp.eq.s32.totalorder %s28, 0
      %p139 = por %p137, %p138
      %s141 = sadd.s32 %s140, 1
      %p144 = scmp.eq.s32.totalorder %s22, 1
      %p145 = scmp.ne.s32.totalorder %s140, %s142
      %p146 = scmp.eq.s32.totalorder %s22, 0
      %p147 = por %p145, %p146
      %p148 = scmp.ne.s32.totalorder %s140, %s142
      %p149 = scmp.eq.s32.totalorder %s27, 1
      %p150 = por %p148, %p149
      %p151 = scmp.ne.s32.totalorder %s142, %s143
      %p152 = scmp.eq.s32.totalorder %s27, 0
      %p153 = por %p151, %p152
      %p154 = scmp.ne.s32.totalorder %s142, %s143
      %p155 = scmp.eq.s32.totalorder %s28, 1
      %p156 = por %p154, %p155
      %p158 = scmp.ne.s32.totalorder %s143, %s157
      %p159 = scmp.eq.s32.totalorder %s28, 0
      %p160 = por %p158, %p159
      %s162 = sadd.s32 %s161, 1
      %p165 = scmp.eq.s32.totalorder %s22, 1
      %p166 = scmp.ne.s32.totalorder %s161, %s163
      %p167 = scmp.eq.s32.totalorder %s22, 0
      %p168 = por %p166, %p167
      %p169 = scmp.ne.s32.totalorder %s161, %s163
      %p170 = scmp.eq.s32.totalorder %s27, 1
      %p171 = por %p169, %p170
      %p172 = scmp.ne.s32.totalorder %s163, %s164
      %p173 = scmp.eq.s32.totalorder %s27, 0
      %p174 = por %p172, %p173
      %p175 = scmp.ne.s32.totalorder %s163, %s164
      %p176 = scmp.eq.s32.totalorder %s28, 1
      %p177 = por %p175, %p176
      %p179 = scmp.ne.s32.totalorder %s164, %s178
      %p180 = scmp.eq.s32.totalorder %s28, 0
      %p181 = por %p179, %p180
      %s182 = ssub.s32 %s22, %s29
      %p183 = scmp.eq.s32.totalorder %s182, 0
      %s185 = sadd.s32 %s184, 1
      %s186 = scalar_select %p183, %s184, %s185
      %p189 = pneg %p183
      %p190 = scmp.eq.s32.totalorder %s22, 1
      %p191 = por %p189, %p190
      %p192 = scmp.ne.s32.totalorder %s184, %s187
      %p193 = scmp.eq.s32.totalorder %s22, 0
      %p194 = por %p192, %p193
      %p195 = scmp.ne.s32.totalorder %s184, %s187
      %p196 = scmp.eq.s32.totalorder %s27, 1
      %p197 = por %p195, %p196
      %p198 = scmp.ne.s32.totalorder %s187, %s188
      %p199 = scmp.eq.s32.totalorder %s27, 0
      %p200 = por %p198, %p199
      %p201 = scmp.ne.s32.totalorder %s187, %s188
      %p202 = scmp.eq.s32.totalorder %s28, 1
      %p203 = por %p201, %p202
      %p205 = scmp.ne.s32.totalorder %s188, %s204
      %p206 = scmp.eq.s32.totalorder %s28, 0
      %p207 = por %p205, %p206
      %p208 = scmp.le.s32.totalorder 1, %s22
      %p209 = scmp.lt.s32.totalorder %s22, 3
      %p210 = pnand %p208, %p209
      %p211 = pneg %p210
      // Predicated region
      $region9: #{tpu_custom_call.1} parent=5 // pred_check
        _
      $region10: #{tpu_custom_call.1} parent=5 // pred_check_branch
        %213 = sbr.rel (%p210) target = $region12
      $region11: #{tpu_custom_call.1} parent=5 // pred_region
        %s214 = ssub.s32 %s22, 1
        // Predicated region
        $region13: #{tpu_custom_call.1} parent=11 // pred_check
          %p215 = pneg %p69
        $region14: #{tpu_custom_call.1} parent=11 // pred_check_branch
          %217 = sbr.rel (%p215) target = $region16
        $region15: #{tpu_custom_call.1} parent=11 // pred_region
          %s219 = ssub.s32 3072, 3072
          %220 = vsyncadd [#allocation7], %s219
          %s221 = sshll.u32 [#allocation6], 4
          %s222 = int_to_ptr.vmem [resolvable:$true] %s221
          %227 = dma.hbm_to_vmem [thread:$0]  %s1, 3072, %s222, [#allocation7], 128, 128, 8
        $region16: #{tpu_custom_call.1} parent=11 // pred_fallthru
          _
        // Predicated region
        $region17: #{tpu_custom_call.1} parent=11 // pred_check
          %p228 = pneg %p90
        $region18: #{tpu_custom_call.1} parent=11 // pred_check_branch
          %230 = sbr.rel (%p228) target = $region20
        $region19: #{tpu_custom_call.1} parent=11 // pred_region
          %s232 = ssub.s32 16, 16
          %233 = vsyncadd [#allocation7], %s232
          %s235 = sshll.u32 [#allocation8], 4
          %s236 = int_to_ptr.vmem [resolvable:$true] %s235
          %238 = dma.hbm_to_vmem [thread:$0]  %s2, 16, %s236, [#allocation7]
        $region20: #{tpu_custom_call.1} parent=11 // pred_fallthru
          _
        // Predicated region
        $region21: #{tpu_custom_call.1} parent=11 // pred_check
          %p239 = pneg %p111
        $region22: #{tpu_custom_call.1} parent=11 // pred_check_branch
          %241 = sbr.rel (%p239) target = $region24
        $region23: #{tpu_custom_call.1} parent=11 // pred_region
          %s243 = ssub.s32 16, 16
          %244 = vsyncadd [#allocation10], %s243
          %s246 = sshll.u32 [#allocation9], 4
          %s247 = int_to_ptr.vmem [resolvable:$true] %s246
          %249 = dma.hbm_to_vmem [thread:$0]  %s3, 16, %s247, [#allocation10]
        $region24: #{tpu_custom_call.1} parent=11 // pred_fallthru
          _
        // Predicated region
        $region25: #{tpu_custom_call.1} parent=11 // pred_check
          %p250 = pneg %p132
        $region26: #{tpu_custom_call.1} parent=11 // pred_check_branch
          %252 = sbr.rel (%p250) target = $region28
        $region27: #{tpu_custom_call.1} parent=11 // pred_region
          %s254 = ssub.s32 6144, 6144
          %255 = vsyncadd [#allocation10], %s254
          %s256 = sshll.u32 [#allocation11], 4
          %s257 = int_to_ptr.vmem [resolvable:$true] %s256
          %262 = dma.hbm_to_vmem [thread:$0]  %s4, 6144, %s257, [#allocation10], 128, 128, 8
        $region28: #{tpu_custom_call.1} parent=11 // pred_fallthru
          _
        // Predicated region
        $region29: #{tpu_custom_call.1} parent=11 // pred_check
          %p263 = pneg %p153
        $region30: #{tpu_custom_call.1} parent=11 // pred_check_branch
          %265 = sbr.rel (%p263) target = $region32
        $region31: #{tpu_custom_call.1} parent=11 // pred_region
          %s267 = ssub.s32 16, 16
          %268 = vsyncadd [#allocation13], %s267
          %s270 = sshll.u32 [#allocation12], 4
          %s271 = int_to_ptr.vmem [resolvable:$true] %s270
          %273 = dma.hbm_to_vmem [thread:$0]  %s5, 16, %s271, [#allocation13]
        $region32: #{tpu_custom_call.1} parent=11 // pred_fallthru
          _
        // Predicated region
        $region33: #{tpu_custom_call.1} parent=11 // pred_check
          %p274 = pneg %p174
        $region34: #{tpu_custom_call.1} parent=11 // pred_check_branch
          %276 = sbr.rel (%p274) target = $region36
        $region35: #{tpu_custom_call.1} parent=11 // pred_region
          %s278 = ssub.s32 16, 16
          %279 = vsyncadd [#allocation13], %s278
          %s281 = sshll.u32 [#allocation14], 4
          %s282 = int_to_ptr.vmem [resolvable:$true] %s281
          %284 = dma.hbm_to_vmem [thread:$0]  %s6, 16, %s282, [#allocation13]
        $region36: #{tpu_custom_call.1} parent=11 // pred_fallthru
          _
      $region12: #{tpu_custom_call.1} parent=5 // pred_fallthru
        _
      %p285 = scmp.lt.s32.totalorder %s22, 2
      // Predicated region
      $region37: #{tpu_custom_call.1} parent=5 // pred_check
        %p286 = pneg %p285
      $region38: #{tpu_custom_call.1} parent=5 // pred_check_branch
        %288 = sbr.rel (%p286) target = $region40
      $region39: #{tpu_custom_call.1} parent=5 // pred_region
        // Predicated region
        $region41: #{tpu_custom_call.1} parent=39 // pred_check
          %p289 = pneg %p42
        $region42: #{tpu_custom_call.1} parent=39 // pred_check_branch
          %291 = sbr.rel (%p289) target = $region44
        $region43: #{tpu_custom_call.1} parent=39 // pred_region
          %s292 = sand.u32 %s32, 1
          %s293 = scalar_lea.sflag [#allocation4], %s292
          %s294 = sand.u32 %s32, 1
          %s295 = smul.addr %s294, 24
          %s296 = scalar_lea.vmem [#allocation3], %s295
          %s298 = ssub.s32 384, 384
          %299 = vsyncadd %s293, %s298
          %s300 = smul.addr %s22, 3
          %s301 = smul.addr %s300, 128
          %s302 = scalar_lea.hbm %s0, %s301
          %s303 = sshll.u32 %s296, 4
          %s304 = int_to_ptr.vmem [resolvable:$true] %s303
          %309 = dma.hbm_to_vmem [thread:$0]  %s302, 384, %s304, %s293, 128, 128, 8
        $region44: #{tpu_custom_call.1} parent=39 // pred_fallthru
          _
      $region40: #{tpu_custom_call.1} parent=5 // pred_fallthru
        _
      %p310 = scmp.le.s32.totalorder 1, %s22
      %p311 = scmp.lt.s32.totalorder %s22, 3
      %p312 = pnand %p310, %p311
      %p313 = pneg %p312
      // Predicated region
      $region45: #{tpu_custom_call.1} parent=5 // pred_check
        _
      $region46: #{tpu_custom_call.1} parent=5 // pred_check_branch
        %315 = sbr.rel (%p312) target = $region48
      $region47: #{tpu_custom_call.1} parent=5 // pred_region
        %s316 = ssub.s32 %s22, 1
        %s317 = sand.u32 %s35, 1
        %s318 = scalar_lea.sflag [#allocation4], %s317
        %s319 = sand.u32 %s35, 1
        %s320 = smul.addr %s319, 24
        %s321 = scalar_lea.vmem [#allocation3], %s320
        // Predicated region
        $region49: #{tpu_custom_call.1} parent=47 // pred_check
          %p322 = pneg %p48
        $region50: #{tpu_custom_call.1} parent=47 // pred_check_branch
          %324 = sbr.rel (%p322) target = $region52
        $region51: #{tpu_custom_call.1} parent=47 // pred_region
          %325 = dma.done %s318, 384
        $region52: #{tpu_custom_call.1} parent=47 // pred_fallthru
          _
        // Predicated region
        $region53: #{tpu_custom_call.1} parent=47 // pred_check
          %p326 = pneg %p69
        $region54: #{tpu_custom_call.1} parent=47 // pred_check_branch
          %328 = sbr.rel (%p326) target = $region56
        $region55: #{tpu_custom_call.1} parent=47 // pred_region
          %329 = dma.done [#allocation7], 3072
        $region56: #{tpu_custom_call.1} parent=47 // pred_fallthru
          _
        // Predicated region
        $region57: #{tpu_custom_call.1} parent=47 // pred_check
          %p330 = pneg %p90
        $region58: #{tpu_custom_call.1} parent=47 // pred_check_branch
          %332 = sbr.rel (%p330) target = $region60
        $region59: #{tpu_custom_call.1} parent=47 // pred_region
          %333 = dma.done [#allocation7], 16
        $region60: #{tpu_custom_call.1} parent=47 // pred_fallthru
          _
        // Predicated region
        $region61: #{tpu_custom_call.1} parent=47 // pred_check
          %p334 = pneg %p111
        $region62: #{tpu_custom_call.1} parent=47 // pred_check_branch
          %336 = sbr.rel (%p334) target = $region64
        $region63: #{tpu_custom_call.1} parent=47 // pred_region
          %337 = dma.done [#allocation10], 16
        $region64: #{tpu_custom_call.1} parent=47 // pred_fallthru
          _
        // Predicated region
        $region65: #{tpu_custom_call.1} parent=47 // pred_check
          %p338 = pneg %p132
        $region66: #{tpu_custom_call.1} parent=47 // pred_check_branch
          %340 = sbr.rel (%p338) target = $region68
        $region67: #{tpu_custom_call.1} parent=47 // pred_region
          %341 = dma.done [#allocation10], 6144
        $region68: #{tpu_custom_call.1} parent=47 // pred_fallthru
          _
        // Predicated region
        $region69: #{tpu_custom_call.1} parent=47 // pred_check
          %p342 = pneg %p153
        $region70: #{tpu_custom_call.1} parent=47 // pred_check_branch
          %344 = sbr.rel (%p342) target = $region72
        $region71: #{tpu_custom_call.1} parent=47 // pred_region
          %345 = dma.done [#allocation13], 16
        $region72: #{tpu_custom_call.1} parent=47 // pred_fallthru
          _
        // Predicated region
        $region73: #{tpu_custom_call.1} parent=47 // pred_check
          %p346 = pneg %p174
        $region74: #{tpu_custom_call.1} parent=47 // pred_check_branch
          %348 = sbr.rel (%p346) target = $region76
        $region75: #{tpu_custom_call.1} parent=47 // pred_region
          %349 = dma.done [#allocation13], 16
        $region76: #{tpu_custom_call.1} parent=47 // pred_fallthru
          _
        %s350 = sand.u32 %s35, 1
        %s351 = scalar_lea.sflag [#allocation4], %s350
        %s352 = sand.u32 %s35, 1
        %s353 = smul.addr %s352, 24
        %s354 = scalar_lea.vmem [#allocation3], %s353
        %p355 = pneg %p48
        %p356 = pneg %p45
        %p357 = pneg %p69
        %p358 = pneg %p66
        %p359 = pneg %p90
        %p360 = pneg %p87
        %p361 = pneg %p111
        %p362 = pneg %p108
        %p363 = pneg %p132
        %p364 = pneg %p129
        %p365 = pneg %p153
        %p366 = pneg %p150
        %p367 = pneg %p174
        %p368 = pneg %p171
        %p369 = pneg %p200
        %p370 = pneg %p197
        %s371 = sand.u32 %s187, 1
        %s372 = scalar_lea.sflag [#allocation5], %s371
        %s373 = sand.u32 %s187, 1
        %s374 = smul.addr %s373, 16
        %s375 = scalar_lea.vmem [#allocation15], %s374
        %v376 = vld [vmem:[%s321] sm:$0xff]
        %v377 = vld [vmem:[%s321 + $0x8] sm:$0xff]
        %v378 = vld [vmem:[#allocation6] sm:$0xff]
        %v379 = vld [vmem:[#allocation6 + $0x8] sm:$0xff]
        %v380 = vld [vmem:[#allocation6 + $0x10] sm:$0xff]
        %v381 = vld [vmem:[#allocation6 + $0x18] sm:$0xff]
        %v382 = vld [vmem:[#allocation6 + $0x20] sm:$0xff]
        %v383 = vld [vmem:[#allocation6 + $0x28] sm:$0xff]
        %v384 = vld [vmem:[#allocation6 + $0x30] sm:$0xff]
        %v385 = vld [vmem:[#allocation6 + $0x38] sm:$0xff]
        %v386 = vld [vmem:[%s321 + $0x1] sm:$0xff]
        %v387 = vld [vmem:[%s321 + $0x9] sm:$0xff]
        %s388 = scalar_lea.vmem [#allocation6], 64
        %v389 = vld [vmem:[%s388] sm:$0xff]
        %v390 = vld [vmem:[%s388 + $0x8] sm:$0xff]
        %v391 = vld [vmem:[%s388 + $0x10] sm:$0xff]
        %v392 = vld [vmem:[%s388 + $0x18] sm:$0xff]
        %v393 = vld [vmem:[%s388 + $0x20] sm:$0xff]
        %v394 = vld [vmem:[%s388 + $0x28] sm:$0xff]
        %v395 = vld [vmem:[%s388 + $0x30] sm:$0xff]
        %v396 = vld [vmem:[%s388 + $0x38] sm:$0xff]
        %vm397 = vcmask 523264
        %v399 = vsel %vm397, %v386, 0
        %v402 = vsel %vm397, %v387, 0
        %404 = vmatprep.subr.mxu0 0.0
        %405 = vmatpush1.msra.mxu0 %v389
        %406 = vmatprep.subr.mxu0 0.0
        %407 = vmatpush1.msra.mxu0 %v390
        %408 = vmatprep.subr.mxu0 0.0
        %409 = vmatpush1.msra.mxu0 %v391
        %410 = vmatprep.subr.mxu0 0.0
        %411 = vmatpush1.msra.mxu0 %v392
        %412 = vmatprep.subr.mxu0 0.0
        %413 = vmatpush1.msra.mxu0 %v393
        %414 = vmatprep.subr.mxu0 0.0
        %415 = vmatpush1.msra.mxu0 %v394
        %416 = vmatprep.subr.mxu0 0.0
        %417 = vmatpush1.msra.mxu0 %v395
        %418 = vmatprep.subr.mxu0 0.0
        %419 = vmatpush1.msra.mxu0 %v396
        %420 = vmatprep.subr.mxu0 0.0
        %421 = vmatpush1.msra.mxu0 0.0
        %422 = vmatprep.subr.mxu0 0.0
        %423 = vmatpush1.msra.mxu0 0.0
        %424 = vmatprep.subr.mxu0 0.0
        %425 = vmatpush1.msra.mxu0 0.0
        %426 = vmatprep.subr.mxu0 0.0
        %427 = vmatpush1.msra.mxu0 0.0
        %428 = vmatprep.subr.mxu0 0.0
        %429 = vmatpush1.msra.mxu0 0.0
        %430 = vmatprep.subr.mxu0 0.0
        %431 = vmatpush1.msra.mxu0 0.0
        %432 = vmatprep.subr.mxu0 0.0
        %433 = vmatpush1.msra.mxu0 0.0
        %434 = vmatprep.subr.mxu0 0.0
        %435 = vmatpush1.msra.mxu0 0.0
        %436 = vmatprep.subr.mxu0 0.0
        %437 = vmatpush1.msra.mxu0 0.0
        %438 = vmatprep.subr.mxu0 0.0
        %439 = vmatpush1.msra.mxu0 0.0
        %440 = vmatprep.subr.mxu0 0.0
        %441 = vmatpush1.msra.mxu0 0.0
        %442 = vmatprep.subr.mxu0 0.0
        %443 = vmatpush1.msra.mxu0 0.0
        %444 = vmatprep.subr.mxu0 0.0
        %445 = vmatpush1.msra.mxu0 0.0
        %446 = vmatprep.subr.mxu0 0.0
        %447 = vmatpush1.msra.mxu0 0.0
        %448 = vmatprep.subr.mxu0 0.0
        %449 = vmatpush1.msra.mxu0 0.0
        %450 = vmatprep.subr.mxu0 0.0
        %451 = vmatpush1.msra.mxu0 0.0
        %452 = vmatprep.subr.mxu0 0.0
        %453 = vmatpush1.msra.mxu0 0.0
        %454 = vmatprep.subr.mxu0 0.0
        %455 = vmatpush1.msra.mxu0 0.0
        %456 = vmatprep.subr.mxu0 0.0
        %457 = vmatpush1.msra.mxu0 0.0
        %458 = vmatprep.subr.mxu0 0.0
        %459 = vmatpush1.msra.mxu0 0.0
        %460 = vmatprep.subr.mxu0 0.0
        %461 = vmatpush1.msra.mxu0 0.0
        %462 = vmatprep.subr.mxu0 0.0
        %463 = vmatpush1.msra.mxu0 0.0
        %464 = vmatprep.subr.mxu0 0.0
        %465 = vmatpush1.msra.mxu0 0.0
        %466 = vmatprep.subr.mxu0 0.0
        %467 = vmatpush1.msra.mxu0 0.0
        %468 = vmatprep.mubr.f32.mxu0 0.0
        %469 = vmatmul.mubr.f32.gmra.mrb[0].mxu0 %v399
        %v470 = vpop.f32.mrb[0].mxu0
        %v471 = vadd.f32 0.0, %v470
        %v472 = vpop.f32.mrb[0].mxu0
        %473 = vmatprep.mubr.f32.mxu0 0.0
        %474 = vmatmul.mubr.f32.gmra.mrb[0].mxu0 %v402
        %v475 = vpop.f32.mrb[0].mxu0
        %v476 = vadd.f32 0.0, %v475
        %v477 = vpop.f32.mrb[0].mxu0
        %478 = vdwg.mxu0
        %v480 = vsel %vm397, %v376, 0
        %v483 = vsel %vm397, %v377, 0
        %485 = vmatprep.subr.mxu0 0.0
        %486 = vmatpush1.msra.mxu0 %v378
        %487 = vmatprep.subr.mxu0 0.0
        %488 = vmatpush1.msra.mxu0 %v379
        %489 = vmatprep.subr.mxu0 0.0
        %490 = vmatpush1.msra.mxu0 %v380
        %491 = vmatprep.subr.mxu0 0.0
        %492 = vmatpush1.msra.mxu0 %v381
        %493 = vmatprep.subr.mxu0 0.0
        %494 = vmatpush1.msra.mxu0 %v382
        %495 = vmatprep.subr.mxu0 0.0
        %496 = vmatpush1.msra.mxu0 %v383
        %497 = vmatprep.subr.mxu0 0.0
        %498 = vmatpush1.msra.mxu0 %v384
        %499 = vmatprep.subr.mxu0 0.0
        %500 = vmatpush1.msra.mxu0 %v385
        %501 = vmatprep.subr.mxu0 0.0
        %502 = vmatpush1.msra.mxu0 0.0
        %503 = vmatprep.subr.mxu0 0.0
        %504 = vmatpush1.msra.mxu0 0.0
        %505 = vmatprep.subr.mxu0 0.0
        %506 = vmatpush1.msra.mxu0 0.0
        %507 = vmatprep.subr.mxu0 0.0
        %508 = vmatpush1.msra.mxu0 0.0
        %509 = vmatprep.subr.mxu0 0.0
        %510 = vmatpush1.msra.mxu0 0.0
        %511 = vmatprep.subr.mxu0 0.0
        %512 = vmatpush1.msra.mxu0 0.0
        %513 = vmatprep.subr.mxu0 0.0
        %514 = vmatpush1.msra.mxu0 0.0
        %515 = vmatprep.subr.mxu0 0.0
        %516 = vmatpush1.msra.mxu0 0.0
        %517 = vmatprep.subr.mxu0 0.0
        %518 = vmatpush1.msra.mxu0 0.0
        %519 = vmatprep.subr.mxu0 0.0
        %520 = vmatpush1.msra.mxu0 0.0
        %521 = vmatprep.subr.mxu0 0.0
        %522 = vmatpush1.msra.mxu0 0.0
        %523 = vmatprep.subr.mxu0 0.0
        %524 = vmatpush1.msra.mxu0 0.0
        %525 = vmatprep.subr.mxu0 0.0
        %526 = vmatpush1.msra.mxu0 0.0
        %527 = vmatprep.subr.mxu0 0.0
        %528 = vmatpush1.msra.mxu0 0.0
        %529 = vmatprep.subr.mxu0 0.0
        %530 = vmatpush1.msra.mxu0 0.0
        %531 = vmatprep.subr.mxu0 0.0
        %532 = vmatpush1.msra.mxu0 0.0
        %533 = vmatprep.subr.mxu0 0.0
        %534 = vmatpush1.msra.mxu0 0.0
        %535 = vmatprep.subr.mxu0 0.0
        %536 = vmatpush1.msra.mxu0 0.0
        %537 = vmatprep.subr.mxu0 0.0
        %538 = vmatpush1.msra.mxu0 0.0
        %539 = vmatprep.subr.mxu0 0.0
        %540 = vmatpush1.msra.mxu0 0.0
        %541 = vmatprep.subr.mxu0 0.0
        %542 = vmatpush1.msra.mxu0 0.0
        %543 = vmatprep.subr.mxu0 0.0
        %544 = vmatpush1.msra.mxu0 0.0
        %545 = vmatprep.subr.mxu0 0.0
        %546 = vmatpush1.msra.mxu0 0.0
        %547 = vmatprep.subr.mxu0 0.0
        %548 = vmatpush1.msra.mxu0 0.0
        %549 = vmatprep.mubr.f32.mxu0 0.0
        %550 = vmatmul.mubr.f32.gmra.mrb[0].mxu0 %v480
        %v551 = vpop.f32.mrb[0].mxu0
        %v552 = vadd.f32 %v471, %v551
        %v553 = vpop.f32.mrb[0].mxu0
        %554 = vmatprep.mubr.f32.mxu0 0.0
        %555 = vmatmul.mubr.f32.gmra.mrb[0].mxu0 %v483
        %v556 = vpop.f32.mrb[0].mxu0
        %v557 = vadd.f32 %v476, %v556
        %v558 = vpop.f32.mrb[0].mxu0
        %559 = vdwg.mxu0
        %v560 = vld [vmem:[%s321 + $0x2] sm:$0xff]
        %v561 = vld [vmem:[%s321 + $0xa] sm:$0xff]
        %s562 = scalar_lea.vmem [#allocation6], 128
        %v563 = vld [vmem:[%s562] sm:$0xff]
        %v564 = vld [vmem:[%s562 + $0x8] sm:$0xff]
        %v565 = vld [vmem:[%s562 + $0x10] sm:$0xff]
        %v566 = vld [vmem:[%s562 + $0x18] sm:$0xff]
        %v567 = vld [vmem:[%s562 + $0x20] sm:$0xff]
        %v568 = vld [vmem:[%s562 + $0x28] sm:$0xff]
        %v569 = vld [vmem:[%s562 + $0x30] sm:$0xff]
        %v570 = vld [vmem:[%s562 + $0x38] sm:$0xff]
        %v572 = vsel %vm397, %v560, 0
        %v575 = vsel %vm397, %v561, 0
        %577 = vmatprep.subr.mxu0 0.0
        %578 = vmatpush1.msra.mxu0 %v563
        %579 = vmatprep.subr.mxu0 0.0
        %580 = vmatpush1.msra.mxu0 %v564
        %581 = vmatprep.subr.mxu0 0.0
        %582 = vmatpush1.msra.mxu0 %v565
        %583 = vmatprep.subr.mxu0 0.0
        %584 = vmatpush1.msra.mxu0 %v566
        %585 = vmatprep.subr.mxu0 0.0
        %586 = vmatpush1.msra.mxu0 %v567
        %587 = vmatprep.subr.mxu0 0.0
        %588 = vmatpush1.msra.mxu0 %v568
        %589 = vmatprep.subr.mxu0 0.0
        %590 = vmatpush1.msra.mxu0 %v569
        %591 = vmatprep.subr.mxu0 0.0
        %592 = vmatpush1.msra.mxu0 %v570
        %593 = vmatprep.subr.mxu0 0.0
        %594 = vmatpush1.msra.mxu0 0.0
        %595 = vmatprep.subr.mxu0 0.0
        %596 = vmatpush1.msra.mxu0 0.0
        %597 = vmatprep.subr.mxu0 0.0
        %598 = vmatpush1.msra.mxu0 0.0
        %599 = vmatprep.subr.mxu0 0.0
        %600 = vmatpush1.msra.mxu0 0.0
        %601 = vmatprep.subr.mxu0 0.0
        %602 = vmatpush1.msra.mxu0 0.0
        %603 = vmatprep.subr.mxu0 0.0
        %604 = vmatpush1.msra.mxu0 0.0
        %605 = vmatprep.subr.mxu0 0.0
        %606 = vmatpush1.msra.mxu0 0.0
        %607 = vmatprep.subr.mxu0 0.0
        %608 = vmatpush1.msra.mxu0 0.0
        %609 = vmatprep.subr.mxu0 0.0
        %610 = vmatpush1.msra.mxu0 0.0
        %611 = vmatprep.subr.mxu0 0.0
        %612 = vmatpush1.msra.mxu0 0.0
        %613 = vmatprep.subr.mxu0 0.0
        %614 = vmatpush1.msra.mxu0 0.0
        %615 = vmatprep.subr.mxu0 0.0
        %616 = vmatpush1.msra.mxu0 0.0
        %617 = vmatprep.subr.mxu0 0.0
        %618 = vmatpush1.msra.mxu0 0.0
        %619 = vmatprep.subr.mxu0 0.0
        %620 = vmatpush1.msra.mxu0 0.0
        %621 = vmatprep.subr.mxu0 0.0
        %622 = vmatpush1.msra.mxu0 0.0
        %623 = vmatprep.subr.mxu0 0.0
        %624 = vmatpush1.msra.mxu0 0.0
        %625 = vmatprep.subr.mxu0 0.0
        %626 = vmatpush1.msra.mxu0 0.0
        %627 = vmatprep.subr.mxu0 0.0
        %628 = vmatpush1.msra.mxu0 0.0
        %629 = vmatprep.subr.mxu0 0.0
        %630 = vmatpush1.msra.mxu0 0.0
        %631 = vmatprep.subr.mxu0 0.0
        %632 = vmatpush1.msra.mxu0 0.0
        %633 = vmatprep.subr.mxu0 0.0
        %634 = vmatpush1.msra.mxu0 0.0
        %635 = vmatprep.subr.mxu0 0.0
        %636 = vmatpush1.msra.mxu0 0.0
        %637 = vmatprep.subr.mxu0 0.0
        %638 = vmatpush1.msra.mxu0 0.0
        %639 = vmatprep.subr.mxu0 0.0
        %640 = vmatpush1.msra.mxu0 0.0
        %641 = vmatprep.mubr.f32.mxu0 0.0
        %642 = vmatmul.mubr.f32.gmra.mrb[0].mxu0 %v572
        %v643 = vpop.f32.mrb[0].mxu0
        %v644 = vadd.f32 0.0, %v643
        %v645 = vpop.f32.mrb[0].mxu0
        %646 = vmatprep.mubr.f32.mxu0 0.0
        %647 = vmatmul.mubr.f32.gmra.mrb[0].mxu0 %v575
        %v648 = vpop.f32.mrb[0].mxu0
        %v649 = vadd.f32 0.0, %v648
        %v650 = vpop.f32.mrb[0].mxu0
        %651 = vdwg.mxu0
        %v652 = vadd.f32 %v552, %v644
        %v653 = vadd.f32 %v557, %v649
        %v654 = vld [vmem:[#allocation8] sm:$0x1]
        %v655 = vld [vmem:[#allocation9] sm:$0x1]
        %656 = vadd.xlane.f32.xlu0 %v652
        %v657 = vpop.xlane.xlu0 %656
        %658 = vadd.xlane.f32.xlu0 %v653
        %v659 = vpop.xlane.xlu0 %658
        %v660 = vadd.f32 %v657, %v659
        %v661 = vrot.slane %v660, 4
        %v662 = vadd.f32 %v660, %v661
        %v663 = vrot.slane %v662, 2
        %v664 = vadd.f32 %v662, %v663
        %v665 = vrot.slane %v664, 1
        %v666 = vadd.f32 %v664, %v665
        %v667 = vmul.f32 %v652, %v652
        %v668 = vmul.f32 %v653, %v653
        %669 = vadd.xlane.f32.xlu0 %v667
        %v670 = vpop.xlane.xlu0 %669
        %671 = vadd.xlane.f32.xlu0 %v668
        %v672 = vpop.xlane.xlu0 %671
        %v673 = vadd.f32 %v670, %v672
        %v674 = vrot.slane %v673, 4
        %v675 = vadd.f32 %v673, %v674
        %v676 = vrot.slane %v675, 2
        %v677 = vadd.f32 %v675, %v676
        %v678 = vrot.slane %v677, 1
        %v679 = vadd.f32 %v677, %v678
        %v680 = vrcp.pop 2048.0
        %v681 = vmul.f32 %v666, %v680
        %v682 = vmul.f32 %v679, %v680
        %v683 = vmul.f32 %v681, %v681
        %v684 = vsub.f32 %v682, %v683
        %v685 = vmax.f32 %v684, 0.0
        %v686 = vsub.f32 %v652, %v681
        %v687 = vsub.f32 %v653, %v681
        %v688 = vadd.f32 %v685, 1e-05
        %v689 = vrsqrt.pop %v688
        %v690 = vmul.f32 %v686, %v689
        %v691 = vmul.f32 %v687, %v689
        %v693 = vlaneseq
        %v694 = vshrl.u32 %v693, 7
        %v695 = vsub.s32 0, %v694
        %v696 = vrot.slane %v654, %v695
        %v698 = vmul.f32 %v690, %v696
        %v699 = vmul.f32 %v691, %v696
        %v701 = vlaneseq
        %v702 = vshrl.u32 %v701, 7
        %v703 = vsub.s32 0, %v702
        %v704 = vrot.slane %v655, %v703
        %v706 = vadd.f32 %v698, %v704
        %v707 = vadd.f32 %v699, %v704
        %v708 = vmul.f32 %v706, 0.5
        %v709 = vmul.f32 %v707, 0.5
        %v710 = vmul.f32 %v706, 0.70710677
        %v711 = vmul.f32 %v707, 0.70710677
        %vm712 = vcmp.lt.f32.partialorder %v710, 0.0
        %vm713 = vcmp.lt.f32.partialorder %v711, 0.0
        %v714 = vsel %vm712, -1.0, 1.0
        %v715 = vsel %vm713, -1.0, 1.0
        %v716 = vand.u32 2147483647, %v710
        %v717 = vand.u32 2147483647, %v711
        %v718 = vmul.f32 %v716, 0.3275911
        %v719 = vmul.f32 %v717, 0.3275911
        %v720 = vadd.f32 %v718, 1.0
        %v721 = vadd.f32 %v719, 1.0
        %v722 = vrcp.pop %v720
        %v723 = vmul.f32 1.0, %v722
        %v724 = vrcp.pop %v721
        %v725 = vmul.f32 1.0, %v724
        %v726 = vmul.f32 %v723, 1.0614054
        %v727 = vmul.f32 %v725, 1.0614054
        %v728 = vadd.f32 %v726, -1.4531521
        %v729 = vadd.f32 %v727, -1.4531521
        %v730 = vmul.f32 %v728, %v723
        %v731 = vmul.f32 %v729, %v725
        %v732 = vadd.f32 %v730, 1.4214138
        %v733 = vadd.f32 %v731, 1.4214138
        %v734 = vmul.f32 %v732, %v723
        %v735 = vmul.f32 %v733, %v725
        %v736 = vadd.f32 %v734, -0.28449672
        %v737 = vadd.f32 %v735, -0.28449672
        %v738 = vmul.f32 %v736, %v723
        %v739 = vmul.f32 %v737, %v725
        %v740 = vadd.f32 %v738, 0.2548296
        %v741 = vadd.f32 %v739, 0.2548296
        %v742 = vmul.f32 %v740, %v723
        %v743 = vmul.f32 %v741, %v725
        %v744 = vsub.f32 0.0, %v716
        %v745 = vsub.f32 0.0, %v717
        %v746 = vmul.f32 %v744, %v716
        %v747 = vmul.f32 %v745, %v717
        %v748 = vmul.f32 %v746, 1.442695
        %v749 = vpow.pop %v748
        %v750 = vmul.f32 %v747, 1.442695
        %v751 = vpow.pop %v750
        %v752 = vmul.f32 %v742, %v749
        %v753 = vmul.f32 %v743, %v751
        %v754 = vsub.f32 1.0, %v752
        %v755 = vsub.f32 1.0, %v753
        %v756 = vmul.f32 %v714, %v754
        %v757 = vmul.f32 %v715, %v755
        %v758 = vadd.f32 %v756, 1.0
        %v759 = vadd.f32 %v757, 1.0
        %v760 = vmul.f32 %v708, %v758
        %v761 = vmul.f32 %v709, %v759
        %762 = vst [vmem:[#allocation2] sm:$0xff] 0.0
        %763 = vst [vmem:[#allocation2 + $0x8] sm:$0xff] 0.0
        %764 = vst [vmem:[#allocation2 + $0x10] sm:$0xff] 0.0
        %765 = vst [vmem:[#allocation2 + $0x18] sm:$0x1] 0.0
        %766 = vst [vmem:[#allocation2 + $0x8] sm:$0xff] %v760
        %767 = vst [vmem:[#allocation2 + $0x10] sm:$0xff] %v761
        %v768 = vld [vmem:[#allocation2 + $0x7] sm:$0xff]
        %v769 = vld [vmem:[#allocation2 + $0xf] sm:$0xff]
        %v770 = vld [vmem:[#allocation11] sm:$0xff]
        %v771 = vld [vmem:[#allocation11 + $0x8] sm:$0xff]
        %v772 = vld [vmem:[#allocation11 + $0x10] sm:$0xff]
        %v773 = vld [vmem:[#allocation11 + $0x18] sm:$0xff]
        %v774 = vld [vmem:[#allocation11 + $0x20] sm:$0xff]
        %v775 = vld [vmem:[#allocation11 + $0x28] sm:$0xff]
        %v776 = vld [vmem:[#allocation11 + $0x30] sm:$0xff]
        %v777 = vld [vmem:[#allocation11 + $0x38] sm:$0xff]
        %v778 = vld [vmem:[#allocation11 + $0x40] sm:$0xff]
        %v779 = vld [vmem:[#allocation11 + $0x48] sm:$0xff]
        %v780 = vld [vmem:[#allocation11 + $0x50] sm:$0xff]
        %v781 = vld [vmem:[#allocation11 + $0x58] sm:$0xff]
        %v782 = vld [vmem:[#allocation11 + $0x60] sm:$0xff]
        %v783 = vld [vmem:[#allocation11 + $0x68] sm:$0xff]
        %v784 = vld [vmem:[#allocation11 + $0x70] sm:$0xff]
        %v785 = vld [vmem:[#allocation11 + $0x78] sm:$0xff]
        %v786 = vld [vmem:[#allocation2 + $0x8] sm:$0xff]
        %v787 = vld [vmem:[#allocation2 + $0x10] sm:$0xff]
        %s788 = scalar_lea.vmem [#allocation11], 128
        %v789 = vld [vmem:[%s788] sm:$0xff]
        %v790 = vld [vmem:[%s788 + $0x8] sm:$0xff]
        %v791 = vld [vmem:[%s788 + $0x10] sm:$0xff]
        %v792 = vld [vmem:[%s788 + $0x18] sm:$0xff]
        %v793 = vld [vmem:[%s788 + $0x20] sm:$0xff]
        %v794 = vld [vmem:[%s788 + $0x28] sm:$0xff]
        %v795 = vld [vmem:[%s788 + $0x30] sm:$0xff]
        %v796 = vld [vmem:[%s788 + $0x38] sm:$0xff]
        %v797 = vld [vmem:[%s788 + $0x40] sm:$0xff]
        %v798 = vld [vmem:[%s788 + $0x48] sm:$0xff]
        %v799 = vld [vmem:[%s788 + $0x50] sm:$0xff]
        %v800 = vld [vmem:[%s788 + $0x58] sm:$0xff]
        %v801 = vld [vmem:[%s788 + $0x60] sm:$0xff]
        %v802 = vld [vmem:[%s788 + $0x68] sm:$0xff]
        %v803 = vld [vmem:[%s788 + $0x70] sm:$0xff]
        %v804 = vld [vmem:[%s788 + $0x78] sm:$0xff]
        %805 = vmatprep.subr.mxu0 0.0
        %806 = vmatpush1.msra.mxu0 %v789
        %807 = vmatprep.subr.mxu0 0.0
        %808 = vmatpush1.msra.mxu0 %v790
        %809 = vmatprep.subr.mxu0 0.0
        %810 = vmatpush1.msra.mxu0 %v791
        %811 = vmatprep.subr.mxu0 0.0
        %812 = vmatpush1.msra.mxu0 %v792
        %813 = vmatprep.subr.mxu0 0.0
        %814 = vmatpush1.msra.mxu0 %v793
        %815 = vmatprep.subr.mxu0 0.0
        %816 = vmatpush1.msra.mxu0 %v794
        %817 = vmatprep.subr.mxu0 0.0
        %818 = vmatpush1.msra.mxu0 %v795
        %819 = vmatprep.subr.mxu0 0.0
        %820 = vmatpush1.msra.mxu0 %v796
        %821 = vmatprep.subr.mxu0 0.0
        %822 = vmatpush1.msra.mxu0 %v797
        %823 = vmatprep.subr.mxu0 0.0
        %824 = vmatpush1.msra.mxu0 %v798
        %825 = vmatprep.subr.mxu0 0.0
        %826 = vmatpush1.msra.mxu0 %v799
        %827 = vmatprep.subr.mxu0 0.0
        %828 = vmatpush1.msra.mxu0 %v800
        %829 = vmatprep.subr.mxu0 0.0
        %830 = vmatpush1.msra.mxu0 %v801
        %831 = vmatprep.subr.mxu0 0.0
        %832 = vmatpush1.msra.mxu0 %v802
        %833 = vmatprep.subr.mxu0 0.0
        %834 = vmatpush1.msra.mxu0 %v803
        %835 = vmatprep.subr.mxu0 0.0
        %836 = vmatpush1.msra.mxu0 %v804
        %837 = vmatprep.subr.mxu0 0.0
        %838 = vmatpush1.msra.mxu0 0.0
        %839 = vmatprep.subr.mxu0 0.0
        %840 = vmatpush1.msra.mxu0 0.0
        %841 = vmatprep.subr.mxu0 0.0
        %842 = vmatpush1.msra.mxu0 0.0
        %843 = vmatprep.subr.mxu0 0.0
        %844 = vmatpush1.msra.mxu0 0.0
        %845 = vmatprep.subr.mxu0 0.0
        %846 = vmatpush1.msra.mxu0 0.0
        %847 = vmatprep.subr.mxu0 0.0
        %848 = vmatpush1.msra.mxu0 0.0
        %849 = vmatprep.subr.mxu0 0.0
        %850 = vmatpush1.msra.mxu0 0.0
        %851 = vmatprep.subr.mxu0 0.0
        %852 = vmatpush1.msra.mxu0 0.0
        %853 = vmatprep.subr.mxu0 0.0
        %854 = vmatpush1.msra.mxu0 0.0
        %855 = vmatprep.subr.mxu0 0.0
        %856 = vmatpush1.msra.mxu0 0.0
        %857 = vmatprep.subr.mxu0 0.0
        %858 = vmatpush1.msra.mxu0 0.0
        %859 = vmatprep.subr.mxu0 0.0
        %860 = vmatpush1.msra.mxu0 0.0
        %861 = vmatprep.subr.mxu0 0.0
        %862 = vmatpush1.msra.mxu0 0.0
        %863 = vmatprep.subr.mxu0 0.0
        %864 = vmatpush1.msra.mxu0 0.0
        %865 = vmatprep.subr.mxu0 0.0
        %866 = vmatpush1.msra.mxu0 0.0
        %867 = vmatprep.subr.mxu0 0.0
        %868 = vmatpush1.msra.mxu0 0.0
        %869 = vmatprep.mubr.f32.mxu0 0.0
        %870 = vmatmul.mubr.f32.gmra.mrb[0].mxu0 %v786
        %v871 = vpop.f32.mrb[0].mxu0
        %v872 = vadd.f32 0.0, %v871
        %v873 = vpop.f32.mrb[0].mxu0
        %874 = vmatprep.mubr.f32.mxu0 0.0
        %875 = vmatmul.mubr.f32.gmra.mrb[0].mxu0 %v787
        %v876 = vpop.f32.mrb[0].mxu0
        %v877 = vadd.f32 0.0, %v876
        %v878 = vpop.f32.mrb[0].mxu0
        %879 = vdwg.mxu0
        %880 = vmatprep.subr.mxu0 0.0
        %881 = vmatpush1.msra.mxu0 %v770
        %882 = vmatprep.subr.mxu0 0.0
        %883 = vmatpush1.msra.mxu0 %v771
        %884 = vmatprep.subr.mxu0 0.0
        %885 = vmatpush1.msra.mxu0 %v772
        %886 = vmatprep.subr.mxu0 0.0
        %887 = vmatpush1.msra.mxu0 %v773
        %888 = vmatprep.subr.mxu0 0.0
        %889 = vmatpush1.msra.mxu0 %v774
        %890 = vmatprep.subr.mxu0 0.0
        %891 = vmatpush1.msra.mxu0 %v775
        %892 = vmatprep.subr.mxu0 0.0
        %893 = vmatpush1.msra.mxu0 %v776
        %894 = vmatprep.subr.mxu0 0.0
        %895 = vmatpush1.msra.mxu0 %v777
        %896 = vmatprep.subr.mxu0 0.0
        %897 = vmatpush1.msra.mxu0 %v778
        %898 = vmatprep.subr.mxu0 0.0
        %899 = vmatpush1.msra.mxu0 %v779
        %900 = vmatprep.subr.mxu0 0.0
        %901 = vmatpush1.msra.mxu0 %v780
        %902 = vmatprep.subr.mxu0 0.0
        %903 = vmatpush1.msra.mxu0 %v781
        %904 = vmatprep.subr.mxu0 0.0
        %905 = vmatpush1.msra.mxu0 %v782
        %906 = vmatprep.subr.mxu0 0.0
        %907 = vmatpush1.msra.mxu0 %v783
        %908 = vmatprep.subr.mxu0 0.0
        %909 = vmatpush1.msra.mxu0 %v784
        %910 = vmatprep.subr.mxu0 0.0
        %911 = vmatpush1.msra.mxu0 %v785
        %912 = vmatprep.subr.mxu0 0.0
        %913 = vmatpush1.msra.mxu0 0.0
        %914 = vmatprep.subr.mxu0 0.0
        %915 = vmatpush1.msra.mxu0 0.0
        %916 = vmatprep.subr.mxu0 0.0
        %917 = vmatpush1.msra.mxu0 0.0
        %918 = vmatprep.subr.mxu0 0.0
        %919 = vmatpush1.msra.mxu0 0.0
        %920 = vmatprep.subr.mxu0 0.0
        %921 = vmatpush1.msra.mxu0 0.0
        %922 = vmatprep.subr.mxu0 0.0
        %923 = vmatpush1.msra.mxu0 0.0
        %924 = vmatprep.subr.mxu0 0.0
        %925 = vmatpush1.msra.mxu0 0.0
        %926 = vmatprep.subr.mxu0 0.0
        %927 = vmatpush1.msra.mxu0 0.0
        %928 = vmatprep.subr.mxu0 0.0
        %929 = vmatpush1.msra.mxu0 0.0
        %930 = vmatprep.subr.mxu0 0.0
        %931 = vmatpush1.msra.mxu0 0.0
        %932 = vmatprep.subr.mxu0 0.0
        %933 = vmatpush1.msra.mxu0 0.0
        %934 = vmatprep.subr.mxu0 0.0
        %935 = vmatpush1.msra.mxu0 0.0
        %936 = vmatprep.subr.mxu0 0.0
        %937 = vmatpush1.msra.mxu0 0.0
        %938 = vmatprep.subr.mxu0 0.0
        %939 = vmatpush1.msra.mxu0 0.0
        %940 = vmatprep.subr.mxu0 0.0
        %941 = vmatpush1.msra.mxu0 0.0
        %942 = vmatprep.subr.mxu0 0.0
        %943 = vmatpush1.msra.mxu0 0.0
        %944 = vmatprep.mubr.f32.mxu0 0.0
        %945 = vmatmul.mubr.f32.gmra.mrb[0].mxu0 %v768
        %v946 = vpop.f32.mrb[0].mxu0
        %v947 = vadd.f32 %v872, %v946
        %v948 = vpop.f32.mrb[0].mxu0
        %949 = vmatprep.mubr.f32.mxu0 0.0
        %950 = vmatmul.mubr.f32.gmra.mrb[0].mxu0 %v769
        %v951 = vpop.f32.mrb[0].mxu0
        %v952 = vadd.f32 %v877, %v951
        %v953 = vpop.f32.mrb[0].mxu0
        %954 = vdwg.mxu0
        %v955 = vld [vmem:[#allocation2 + $0x9] sm:$0xff]
        %v956 = vld [vmem:[#allocation2 + $0x11] sm:$0xff]
        %s957 = scalar_lea.vmem [#allocation11], 256
        %v958 = vld [vmem:[%s957] sm:$0xff]
        %v959 = vld [vmem:[%s957 + $0x8] sm:$0xff]
        %v960 = vld [vmem:[%s957 + $0x10] sm:$0xff]
        %v961 = vld [vmem:[%s957 + $0x18] sm:$0xff]
        %v962 = vld [vmem:[%s957 + $0x20] sm:$0xff]
        %v963 = vld [vmem:[%s957 + $0x28] sm:$0xff]
        %v964 = vld [vmem:[%s957 + $0x30] sm:$0xff]
        %v965 = vld [vmem:[%s957 + $0x38] sm:$0xff]
        %v966 = vld [vmem:[%s957 + $0x40] sm:$0xff]
        %v967 = vld [vmem:[%s957 + $0x48] sm:$0xff]
        %v968 = vld [vmem:[%s957 + $0x50] sm:$0xff]
        %v969 = vld [vmem:[%s957 + $0x58] sm:$0xff]
        %v970 = vld [vmem:[%s957 + $0x60] sm:$0xff]
        %v971 = vld [vmem:[%s957 + $0x68] sm:$0xff]
        %v972 = vld [vmem:[%s957 + $0x70] sm:$0xff]
        %v973 = vld [vmem:[%s957 + $0x78] sm:$0xff]
        %974 = vmatprep.subr.mxu0 0.0
        %975 = vmatpush1.msra.mxu0 %v958
        %976 = vmatprep.subr.mxu0 0.0
        %977 = vmatpush1.msra.mxu0 %v959
        %978 = vmatprep.subr.mxu0 0.0
        %979 = vmatpush1.msra.mxu0 %v960
        %980 = vmatprep.subr.mxu0 0.0
        %981 = vmatpush1.msra.mxu0 %v961
        %982 = vmatprep.subr.mxu0 0.0
        %983 = vmatpush1.msra.mxu0 %v962
        %984 = vmatprep.subr.mxu0 0.0
        %985 = vmatpush1.msra.mxu0 %v963
        %986 = vmatprep.subr.mxu0 0.0
        %987 = vmatpush1.msra.mxu0 %v964
        %988 = vmatprep.subr.mxu0 0.0
        %989 = vmatpush1.msra.mxu0 %v965
        %990 = vmatprep.subr.mxu0 0.0
        %991 = vmatpush1.msra.mxu0 %v966
        %992 = vmatprep.subr.mxu0 0.0
        %993 = vmatpush1.msra.mxu0 %v967
        %994 = vmatprep.subr.mxu0 0.0
        %995 = vmatpush1.msra.mxu0 %v968
        %996 = vmatprep.subr.mxu0 0.0
        %997 = vmatpush1.msra.mxu0 %v969
        %998 = vmatprep.subr.mxu0 0.0
        %999 = vmatpush1.msra.mxu0 %v970
        %1000 = vmatprep.subr.mxu0 0.0
        %1001 = vmatpush1.msra.mxu0 %v971
        %1002 = vmatprep.subr.mxu0 0.0
        %1003 = vmatpush1.msra.mxu0 %v972
        %1004 = vmatprep.subr.mxu0 0.0
        %1005 = vmatpush1.msra.mxu0 %v973
        %1006 = vmatprep.subr.mxu0 0.0
        %1007 = vmatpush1.msra.mxu0 0.0
        %1008 = vmatprep.subr.mxu0 0.0
        %1009 = vmatpush1.msra.mxu0 0.0
        %1010 = vmatprep.subr.mxu0 0.0
        %1011 = vmatpush1.msra.mxu0 0.0
        %1012 = vmatprep.subr.mxu0 0.0
        %1013 = vmatpush1.msra.mxu0 0.0
        %1014 = vmatprep.subr.mxu0 0.0
        %1015 = vmatpush1.msra.mxu0 0.0
        %1016 = vmatprep.subr.mxu0 0.0
        %1017 = vmatpush1.msra.mxu0 0.0
        %1018 = vmatprep.subr.mxu0 0.0
        %1019 = vmatpush1.msra.mxu0 0.0
        %1020 = vmatprep.subr.mxu0 0.0
        %1021 = vmatpush1.msra.mxu0 0.0
        %1022 = vmatprep.subr.mxu0 0.0
        %1023 = vmatpush1.msra.mxu0 0.0
        %1024 = vmatprep.subr.mxu0 0.0
        %1025 = vmatpush1.msra.mxu0 0.0
        %1026 = vmatprep.subr.mxu0 0.0
        %1027 = vmatpush1.msra.mxu0 0.0
        %1028 = vmatprep.subr.mxu0 0.0
        %1029 = vmatpush1.msra.mxu0 0.0
        %1030 = vmatprep.subr.mxu0 0.0
        %1031 = vmatpush1.msra.mxu0 0.0
        %1032 = vmatprep.subr.mxu0 0.0
        %1033 = vmatpush1.msra.mxu0 0.0
        %1034 = vmatprep.subr.mxu0 0.0
        %1035 = vmatpush1.msra.mxu0 0.0
        %1036 = vmatprep.subr.mxu0 0.0
        %1037 = vmatpush1.msra.mxu0 0.0
        %1038 = vmatprep.mubr.f32.mxu0 0.0
        %1039 = vmatmul.mubr.f32.gmra.mrb[0].mxu0 %v955
        %v1040 = vpop.f32.mrb[0].mxu0
        %v1041 = vadd.f32 0.0, %v1040
        %v1042 = vpop.f32.mrb[0].mxu0
        %1043 = vmatprep.mubr.f32.mxu0 0.0
        %1044 = vmatmul.mubr.f32.gmra.mrb[0].mxu0 %v956
        %v1045 = vpop.f32.mrb[0].mxu0
        %v1046 = vadd.f32 0.0, %v1045
        %v1047 = vpop.f32.mrb[0].mxu0
        %1048 = vdwg.mxu0
        %v1049 = vadd.f32 %v947, %v1041
        %v1050 = vadd.f32 %v952, %v1046
        %v1051 = vld [vmem:[#allocation12] sm:$0x1]
        %v1052 = vld [vmem:[#allocation14] sm:$0x1]
        %1053 = vadd.xlane.f32.xlu0 %v1049
        %v1054 = vpop.xlane.xlu0 %1053
        %1055 = vadd.xlane.f32.xlu0 %v1050
        %v1056 = vpop.xlane.xlu0 %1055
        %v1057 = vadd.f32 %v1054, %v1056
        %v1058 = vrot.slane %v1057, 4
        %v1059 = vadd.f32 %v1057, %v1058
        %v1060 = vrot.slane %v1059, 2
        %v1061 = vadd.f32 %v1059, %v1060
        %v1062 = vrot.slane %v1061, 1
        %v1063 = vadd.f32 %v1061, %v1062
        %v1064 = vmul.f32 %v1049, %v1049
        %v1065 = vmul.f32 %v1050, %v1050
        %1066 = vadd.xlane.f32.xlu0 %v1064
        %v1067 = vpop.xlane.xlu0 %1066
        %1068 = vadd.xlane.f32.xlu0 %v1065
        %v1069 = vpop.xlane.xlu0 %1068
        %v1070 = vadd.f32 %v1067, %v1069
        %v1071 = vrot.slane %v1070, 4
        %v1072 = vadd.f32 %v1070, %v1071
        %v1073 = vrot.slane %v1072, 2
        %v1074 = vadd.f32 %v1072, %v1073
        %v1075 = vrot.slane %v1074, 1
        %v1076 = vadd.f32 %v1074, %v1075
        %v1077 = vmul.f32 %v1063, %v680
        %v1078 = vmul.f32 %v1076, %v680
        %v1079 = vmul.f32 %v1077, %v1077
        %v1080 = vsub.f32 %v1078, %v1079
        %v1081 = vmax.f32 %v1080, 0.0
        %v1082 = vsub.f32 %v1049, %v1077
        %v1083 = vsub.f32 %v1050, %v1077
        %v1084 = vadd.f32 %v1081, 1e-05
        %v1085 = vrsqrt.pop %v1084
        %v1086 = vmul.f32 %v1082, %v1085
        %v1087 = vmul.f32 %v1083, %v1085
        %v1089 = vlaneseq
        %v1090 = vshrl.u32 %v1089, 7
        %v1091 = vsub.s32 0, %v1090
        %v1092 = vrot.slane %v1051, %v1091
        %v1094 = vmul.f32 %v1086, %v1092
        %v1095 = vmul.f32 %v1087, %v1092
        %v1097 = vlaneseq
        %v1098 = vshrl.u32 %v1097, 7
        %v1099 = vsub.s32 0, %v1098
        %v1100 = vrot.slane %v1052, %v1099
        %v1102 = vadd.f32 %v1094, %v1100
        %v1103 = vadd.f32 %v1095, %v1100
        %1104 = vst [vmem:[%s375] sm:$0xff] %v1102
        %1105 = vst [vmem:[%s375 + $0x8] sm:$0xff] %v1103
        %s1106 = sand.u32 %s187, 1
        %s1107 = scalar_lea.sflag [#allocation5], %s1106
        %s1108 = sand.u32 %s187, 1
        %s1109 = smul.addr %s1108, 16
        %s1110 = scalar_lea.vmem [#allocation15], %s1109
        // Predicated region
        $region77: #{tpu_custom_call.1} parent=47 // pred_check
          %p1111 = pneg %p197
        $region78: #{tpu_custom_call.1} parent=47 // pred_check_branch
          %1113 = sbr.rel (%p1111) target = $region80
        $region79: #{tpu_custom_call.1} parent=47 // pred_region
          %s1115 = ssub.s32 256, 256
          %1116 = vsyncadd %s1107, %s1115
          %s1117 = smul.addr %s27, 2
          %s1118 = smul.addr %s1117, 128
          %s1119 = scalar_lea.hbm %s7, %s1118
          %s1120 = sshll.u32 %s1110, 4
          %s1121 = int_to_ptr.vmem [resolvable:$true] %s1120
          %1126 = dma.vmem_to_hbm [thread:$0]  %s1121, 256, %s1119, %s1107, 128, 128, 8
        $region80: #{tpu_custom_call.1} parent=47 // pred_fallthru
          _
      $region48: #{tpu_custom_call.1} parent=5 // pred_fallthru
        _
      %p1127 = scmp.le.s32.totalorder 2, %s22
      // Predicated region
      $region81: #{tpu_custom_call.1} parent=5 // pred_check
        %p1128 = pneg %p1127
      $region82: #{tpu_custom_call.1} parent=5 // pred_check_branch
        %1130 = sbr.rel (%p1128) target = $region84
      $region83: #{tpu_custom_call.1} parent=5 // pred_region
        %s1131 = ssub.s32 %s22, 2
        // Predicated region
        $region85: #{tpu_custom_call.1} parent=83 // pred_check
          %p1132 = pneg %p203
        $region86: #{tpu_custom_call.1} parent=83 // pred_check_branch
          %1134 = sbr.rel (%p1132) target = $region88
        $region87: #{tpu_custom_call.1} parent=83 // pred_region
          %s1135 = sand.u32 %s188, 1
          %s1136 = scalar_lea.sflag [#allocation5], %s1135
          %s1137 = sand.u32 %s188, 1
          %s1138 = smul.addr %s1137, 16
          %s1139 = scalar_lea.vmem [#allocation15], %s1138
          %1140 = dma.done %s1136, 256
        $region88: #{tpu_custom_call.1} parent=83 // pred_fallthru
          _
      $region84: #{tpu_custom_call.1} parent=5 // pred_fallthru
        _
    $region6: #{tpu_custom_call.1} parent=1 // loop_footer
      %s26 = sadd.s32 1, %s22
    $region7: #{tpu_custom_call.1} parent=1 // loop_footer_branch
      %21 = sbr.rel target = $region3
    $region8: #{tpu_custom_call.1} parent=1 // loop_exit
      _
    %1141 = vsyncpa [#allocation4], 1
    %s1142 = scalar_lea.sflag [#allocation4], 1
    %1143 = vsyncpa %s1142, 1
    %1144 = vsyncpa [#allocation7], 1
    %1145 = vsyncpa [#allocation10], 1
    %1146 = vsyncpa [#allocation13], 1
    %1147 = vsyncpa [#allocation5], 1
    %s1148 = scalar_lea.sflag [#allocation5], 1
    %1149 = vsyncpa %s1148, 1

</llo_original>
